<compile_context>
chip_gen: v5e
topology: v5e:2x2
jax: 0.10.0
libtpu: 0.0.40
codegen_flags: <defaults>
</compile_context>

<pallas_src>
import functools
import math

import jax
import jax.numpy as jnp
from jax import lax
from jax.experimental import pallas as pl
from jax.experimental.pallas import tpu as pltpu


def _round_up(x, m):
    return (x + m - 1) // m * m


def _device_kind():
    try:
        return jax.devices()[0].device_kind.lower()
    except Exception:
        return ""


def _largest_tile(n_pad, target):
    """Largest multiple of 128 that divides n_pad and is <= target."""
    best, t, limit = 128, 128, min(target, n_pad)
    while t <= limit:
        if n_pad % t == 0:
            best = t
        t += 128
    return best


def _auto_tiles(n_pad, kind):
    # block_m is the arithmetic-intensity knob (column features are re-streamed
    # n_pad/block_m times): v6e crossover ~650 FLOPs/byte (bf16) -> bm ~1024;
    # v7x ~310 and v5e ~240 -> bm 512 is plenty.
    if "v6" in kind:
        bm_target = 1024
    elif "v7" in kind or "v5" in kind:
        bm_target = 512
    else:
        bm_target = 768
    bm = _largest_tile(n_pad, bm_target)
    bn = _largest_tile(n_pad, 512)       # amortize ~0.35us/step, 256^2-MXU friendly
    return bm, bn


def _nwc_loss_kernel(img_r_ref, txt_c_ref, w_col_ref, w_row_ref,
                     aux_row_ref, aux_col_ref, out_ref,
                     m_img, s_img, m_txt, s_txt, t_acc):
    i = pl.program_id(0)     # row-block index (image rows == text-branch cols)
    k = pl.program_id(1)     # col-block index (image-branch reduction axis)
    ni = pl.num_programs(0)
    nk = pl.num_programs(1)

    # ---- init image-branch row accumulators once per row block -------------
    @pl.when(k == 0)
    def _init_rows():
        m_img[...] = jnp.full(m_img.shape, -jnp.inf, dtype=jnp.float32)
        s_img[...] = jnp.zeros(s_img.shape, dtype=jnp.float32)

    # ---- init text-branch column accumulators once per kernel --------------
    @pl.when((i == 0) & (k == 0))
    def _init_cols():
        m_txt[...] = jnp.full(m_txt.shape, -jnp.inf, dtype=jnp.float32)
        s_txt[...] = jnp.zeros(s_txt.shape, dtype=jnp.float32)
        t_acc[...] = jnp.zeros(t_acc.shape, dtype=jnp.float32)

    # ---- one MXU tile serves both branches (logits_per_text = logits.T) ----
    dims = (((1,), (1,)), ((), ()))      # A @ B.T without a transpose op
    l = lax.dot_general(img_r_ref[...], txt_c_ref[...], dims,
                        preferred_element_type=jnp.float32)          # (TM, TN)

    # image branch: row-wise weighted LSE over columns (reduce over k)
    w_col = w_col_ref[...].astype(jnp.float32)                       # (TN, 1)
    m_prev = m_img[...]
    m_new = jnp.maximum(m_prev, jnp.max(l, axis=1, keepdims=True))   # (TM, 1)
    p = jnp.exp(l - m_new)                                           # EUP
    row_sum = lax.dot_general(p, w_col, (((1,), (0,)), ((), ())),
                              preferred_element_type=jnp.float32)    # MXU matvec
    s_img[...] = s_img[...] * jnp.exp(m_prev - m_new) + row_sum
    m_img[...] = m_new

    # text branch: column-wise weighted LSE over rows (reduce over i)
    w_row = w_row_ref[...].astype(jnp.float32)                       # (1, TM)
    mt_prev = m_txt[k]                                               # (1, TN)
    mt_new = jnp.maximum(mt_prev, jnp.max(l, axis=0, keepdims=True))
    q = jnp.exp(l - mt_new)                                          # EUP
    col_sum = lax.dot_general(w_row, q, (((1,), (0,)), ((), ())),
                              preferred_element_type=jnp.float32)    # MXU matvec
    s_txt[k] = s_txt[k] * jnp.exp(mt_prev - mt_new) + col_sum
    m_txt[k] = mt_new

    # ---- text-branch finalize: column LSE of block k completes at last i ---
    @pl.when(i == ni - 1)
    def _finalize_cols():
        auxc = aux_col_ref[...]                    # (3, TN): [w, w*log w, diag]
        w_c, wlogw_c, diag_c = auxc[0:1, :], auxc[1:2, :], auxc[2:3, :]
        logden = m_txt[k] + jnp.log(jnp.maximum(s_txt[k], 1e-30))
        per_col = wlogw_c + w_c * (diag_c - logden)
        part = -jnp.sum(per_col, keepdims=True)                       # (1, 1)
        t_acc[...] = jnp.where(k == 0, 0.0, t_acc[...]) + part

    # ---- image-branch finalize: row LSE of block i completes at last k -----
    @pl.when(k == nk - 1)
    def _finalize_rows():
        auxr = aux_row_ref[...]                    # (TM, 3): [w, w*log w, diag]
        w_r, wlogw_r, diag_r = auxr[:, 0:1], auxr[:, 1:2], auxr[:, 2:3]
        logden = m_img[...] + jnp.log(jnp.maximum(s_img[...], 1e-30))
        per_row = wlogw_r + w_r * (diag_r - logden)
        part = -jnp.sum(per_row, keepdims=True)                       # (1, 1)
        # the last row block also carries the summed text-branch partials
        part = part + jnp.where(i == ni - 1, t_acc[...],
                                jnp.zeros_like(t_acc[...]))
        out_ref[...] = jnp.broadcast_to(part, out_ref.shape)


@functools.partial(jax.jit, static_argnames=("block_m", "block_n", "use_bf16"))
def negative_weighted_clip_loss(image_features, text_features, logit_scale,
                                loss_weights, *, block_m=None, block_n=None,
                                use_bf16=True):
    """world_size == 1 forward of NegativeWeightedClipLoss.

    f32 features are cast to bf16 by default (native MXU path, half the HBM
    traffic); pass use_bf16=False to keep the input dtype.  Softmax / loss math
    is always f32.
    """
    n, d = image_features.shape
    if text_features.shape != (n, d):
        raise ValueError("image/text feature shapes must match")
    w = jnp.reshape(loss_weights, (-1,)).astype(jnp.float32)
    if w.shape[0] != n:
        raise ValueError("loss_weights must have one entry per batch row")

    feat_dtype = jnp.bfloat16 if use_bf16 else image_features.dtype
    scale = jnp.asarray(logit_scale, jnp.float32)
    # Fold logit_scale into the image features once (O(N*D)), not into N^2 logits.
    img = (image_features.astype(jnp.float32) * scale).astype(feat_dtype)
    txt = text_features.astype(feat_dtype)

    # O(N) precomputes for the finalize epilogues, from the exact tensors the
    # kernel consumes (so diag matches the in-kernel diagonal logits).
    diag = jnp.sum(img.astype(jnp.float32) * txt.astype(jnp.float32), axis=-1)
    wlogw = w * jnp.log(jnp.maximum(w, 1e-30))        # 0 for zero/padded weights

    kind = _device_kind()
    if block_m is None or block_n is None:
        n_pad = _round_up(n, 128)
        block_m, block_n = _auto_tiles(n_pad, kind)
    else:
        if block_m % 128 != 0 or block_n % 128 != 0:
            raise ValueError("block_m / block_n must be multiples of 128")
        # NOTE: explicit tiles whose lcm >> 128 force extra (zero-weight, hence
        # correct but wasteful) padding.
        n_pad = _round_up(n, math.lcm(block_m, block_n))

    d_pad = _round_up(d, 128)
    pad_n, pad_d = n_pad - n, d_pad - d
    if pad_n or pad_d:
        # Padded rows/cols carry zero weight -> contribute nothing to the loss.
        img = jnp.pad(img, ((0, pad_n), (0, pad_d)))
        txt = jnp.pad(txt, ((0, pad_n), (0, pad_d)))
        w = jnp.pad(w, (0, pad_n))
        wlogw = jnp.pad(wlogw, (0, pad_n))
        diag = jnp.pad(diag, (0, pad_n))

    gm = n_pad // block_m
    gk = n_pad // block_n

    w_sub = w.reshape(n_pad, 1)                      # column weights (matvec RHS)
    w_lane = w.reshape(1, n_pad)                     # row weights (matvec LHS)
    aux_sub = jnp.stack([w, wlogw, diag], axis=1)    # (n_pad, 3) row-side finalize
    aux_lane = jnp.stack([w, wlogw, diag], axis=0)   # (3, n_pad) col-side finalize

    feat_bytes = jnp.dtype(feat_dtype).itemsize
    vmem_est = (2 * (block_m + block_n) * d_pad * feat_bytes   # dbl-buffered features
                + 2 * 8 * gk * block_n * 4                     # column LSE scratch
                + 8 * block_m * block_n * 4                    # f32 tile temporaries
                + 32 * (block_m + block_n) * 4                 # weights / aux blocks
                + 4 * 8 * 128 * 4)                             # output tiles
    vmem_cap = (48 << 20) if "v7" in kind else (96 << 20)
    vmem_limit = int(min(vmem_cap, max(32 << 20, int(vmem_est * 1.25))))

    out = pl.pallas_call(
        _nwc_loss_kernel,
        out_shape=jax.ShapeDtypeStruct((gm * 8, 128), jnp.float32),
        grid=(gm, gk),
        in_specs=[
            pl.BlockSpec((block_m, d_pad), lambda i, k: (i, 0)),  # image rows (scaled)
            pl.BlockSpec((block_n, d_pad), lambda i, k: (k, 0)),  # text cols
            pl.BlockSpec((block_n, 1), lambda i, k: (k, 0)),      # w, col block (sublane)
            pl.BlockSpec((1, block_m), lambda i, k: (0, i)),      # w, row block (lane)
            pl.BlockSpec((block_m, 3), lambda i, k: (i, 0)),      # [w, wlogw, diag] rows
            pl.BlockSpec((3, block_n), lambda i, k: (0, k)),      # [w, wlogw, diag] cols
        ],
        out_specs=pl.BlockSpec((8, 128), lambda i, k: (i, 0)),
        scratch_shapes=[
            pltpu.VMEM((block_m, 1), jnp.float32),       # m_img
            pltpu.VMEM((block_m, 1), jnp.float32),       # s_img
            pltpu.VMEM((gk, 1, block_n), jnp.float32),   # m_txt (per-column max)
            pltpu.VMEM((gk, 1, block_n), jnp.float32),   # s_txt (per-column sum)
            pltpu.VMEM((1, 1), jnp.float32),             # text-branch partial acc
        ],
        compiler_params=pltpu.CompilerParams(
            # The column accumulator carries across the row-block axis, so it
            # must be "arbitrary" (no v7x megacore split; see header note).
            dimension_semantics=("arbitrary", "arbitrary"),
            vmem_limit_bytes=vmem_limit),
    )(img, txt, w_sub, w_lane, aux_sub, aux_lane)

    # One partial per row block, broadcast over its (8, 128) tile; the last row
    # block also carries the summed text-branch partials.
    return 0.5 * jnp.sum(out[::8, 0])


def _reference_loss(img, txt, scale, w):
    imgf = img.astype(jnp.float32)
    txtf = txt.astype(jnp.float32)
    logits = scale * jnp.matmul(imgf, txtf.T, precision=lax.Precision.HIGHEST)

    def nw(inputs, weight):
        e = jnp.exp(inputs)
        denom = (weight[None, :] * e).sum(axis=1)
        tgt = weight * jnp.diagonal(e)
        return (-weight * jnp.log(tgt / denom)).sum()

    return (nw(logits, w) + nw(logits.T, w)) / 2.0


def _bf16_reference_loss(img, txt, scale, w):
    # Reference with the same one-time bf16 rounding the kernel applies.
    img_s = (img.astype(jnp.float32) * scale).astype(jnp.bfloat16)
    txt_b = txt.astype(jnp.bfloat16)
    return _reference_loss(img_s, txt_b, jnp.float32(1.0), w)


if __name__ == "__main__":
    key = jax.random.PRNGKey(0)
    k_img, k_txt, k_w = jax.random.split(key, 3)

    # --- case 1: f32 features (opt-out path), explicit 2x2 tiling -----------
    N, D = 256, 64
    img = jax.random.normal(k_img, (N, D), dtype=jnp.float32)
    txt = jax.random.normal(k_txt, (N, D), dtype=jnp.float32)
    img = img / jnp.linalg.norm(img, axis=-1, keepdims=True)
    txt = txt / jnp.linalg.norm(txt, axis=-1, keepdims=True)
    w = jax.random.uniform(k_w, (N,), minval=0.2, maxval=3.0, dtype=jnp.float32)
    scale = jnp.float32(4.0)

    loss = jax.block_until_ready(
        negative_weighted_clip_loss(img, txt, scale, w,
                                    block_m=128, block_n=128, use_bf16=False))
    ref = _reference_loss(img, txt, scale, w)
    assert jnp.allclose(loss, ref, rtol=1e-2, atol=1e-2), (loss, ref)

    # --- case 2: default bf16 fast path, explicit 2x2 tiling ----------------
    loss_bf = jax.block_until_ready(
        negative_weighted_clip_loss(img, txt, scale, w,
                                    block_m=128, block_n=128))
    ref_bf = _bf16_reference_loss(img, txt, scale, w)
    assert jnp.allclose(loss_bf, ref_bf, rtol=2e-2, atol=2e-2), (loss_bf, ref_bf)

    # --- case 3: ragged batch -> zero-weight padding, auto tiles ------------
    N2, D2 = 100, 48
    img2 = jax.random.normal(jax.random.PRNGKey(1), (N2, D2), dtype=jnp.float32)
    txt2 = jax.random.normal(jax.random.PRNGKey(2), (N2, D2), dtype=jnp.float32)
    img2 = img2 / jnp.linalg.norm(img2, axis=-1, keepdims=True)
    txt2 = txt2 / jnp.linalg.norm(txt2, axis=-1, keepdims=True)
    w2 = jax.random.uniform(jax.random.PRNGKey(3), (N2,), minval=0.5, maxval=1.5,
                            dtype=jnp.float32)
    loss2 = jax.block_until_ready(
        negative_weighted_clip_loss(img2, txt2, jnp.float32(2.5), w2))
    ref2 = _bf16_reference_loss(img2, txt2, jnp.float32(2.5), w2)
    assert jnp.allclose(loss2, ref2, rtol=2e-2, atol=2e-2), (loss2, ref2)

    # --- case 4: real CLIP-sized logit_scale stays finite (log-domain path) --
    loss_big = jax.block_until_ready(
        negative_weighted_clip_loss(img, txt, jnp.float32(200.0), w,
                                    block_m=128, block_n=128))
    assert bool(jnp.isfinite(loss_big)), loss_big

    print("KERNEL_OK")
</pallas_src>

<mosaic_0001>
module attributes {stable_mosaic.version = 11 : i64} {
  func.func @_nwc_loss_kernel(%arg0: i32, %arg1: i32, %arg2: memref<128x128xf32, #tpu.memory_space<vmem>>, %arg3: memref<128x128xf32, #tpu.memory_space<vmem>>, %arg4: memref<128x1xf32, #tpu.memory_space<vmem>>, %arg5: memref<1x128xf32, #tpu.memory_space<vmem>>, %arg6: memref<128x3xf32, #tpu.memory_space<vmem>>, %arg7: memref<3x128xf32, #tpu.memory_space<vmem>>, %arg8: memref<8x128xf32, #tpu.memory_space<vmem>>, %arg9: memref<128x1xf32, #tpu.memory_space<vmem>>, %arg10: memref<128x1xf32, #tpu.memory_space<vmem>>, %arg11: memref<2x1x128xf32, #tpu.memory_space<vmem>>, %arg12: memref<2x1x128xf32, #tpu.memory_space<vmem>>, %arg13: memref<1x1xf32, #tpu.memory_space<vmem>>) attributes {dimension_semantics = [#tpu.dimension_semantics<arbitrary>, #tpu.dimension_semantics<arbitrary>], iteration_bounds = array<i64: 2, 2>, scalar_prefetch = 0 : i64, scratch_operands = 5 : i64, tpu.core_type = #tpu.core_type<tc>, window_params = [{transform_indices = @transform_0, window_bounds = array<i64: 128, 128>}, {transform_indices = @transform_1, window_bounds = array<i64: 128, 128>}, {transform_indices = @transform_2, window_bounds = array<i64: 128, 1>}, {transform_indices = @transform_3, window_bounds = array<i64: 1, 128>}, {transform_indices = @transform_4, window_bounds = array<i64: 128, 3>}, {transform_indices = @transform_5, window_bounds = array<i64: 3, 128>}, {transform_indices = @transform_6, window_bounds = array<i64: 8, 128>}]} {
    %c0_i32 = arith.constant 0 : i32
    %0 = arith.cmpi eq, %arg1, %c0_i32 : i32
    %1 = arith.extui %0 : i1 to i32
    %c0_i32_0 = arith.constant 0 : i32
    %2 = arith.cmpi ne, %1, %c0_i32_0 : i32
    scf.if %2 {
      %cst_34 = arith.constant 0xFF800000 : f32
      %59 = vector.broadcast %cst_34 : f32 to vector<128x1xf32>
      %c0_35 = arith.constant 0 : index
      %c0_36 = arith.constant 0 : index
      %60 = vector.load %arg9[%c0_35, %c0_36] : memref<128x1xf32, #tpu.memory_space<vmem>>, vector<128x1xf32>
      tpu.vector_store %arg9[%c0_35, %c0_36], %59 {strides = array<i32>} : memref<128x1xf32, #tpu.memory_space<vmem>>, vector<128x1xf32>,
      %cst_37 = arith.constant 0.000000e+00 : f32
      %61 = vector.broadcast %cst_37 : f32 to vector<128x1xf32>
      %c0_38 = arith.constant 0 : index
      %c0_39 = arith.constant 0 : index
      %62 = vector.load %arg10[%c0_38, %c0_39] : memref<128x1xf32, #tpu.memory_space<vmem>>, vector<128x1xf32>
      tpu.vector_store %arg10[%c0_38, %c0_39], %61 {strides = array<i32>} : memref<128x1xf32, #tpu.memory_space<vmem>>, vector<128x1xf32>,
    } else {
    }
    %c0_i32_1 = arith.constant 0 : i32
    %3 = arith.cmpi eq, %arg0, %c0_i32_1 : i32
    %c0_i32_2 = arith.constant 0 : i32
    %4 = arith.cmpi eq, %arg1, %c0_i32_2 : i32
    %5 = arith.andi %3, %4 : i1
    %6 = arith.extui %5 : i1 to i32
    %c0_i32_3 = arith.constant 0 : i32
    %7 = arith.cmpi ne, %6, %c0_i32_3 : i32
    scf.if %7 {
      %cst_34 = arith.constant 0xFF800000 : f32
      %59 = vector.broadcast %cst_34 : f32 to vector<2x1x128xf32>
      %c0_35 = arith.constant 0 : index
      %c0_36 = arith.constant 0 : index
      %c0_37 = arith.constant 0 : index
      %60 = vector.load %arg11[%c0_35, %c0_36, %c0_37] : memref<2x1x128xf32, #tpu.memory_space<vmem>>, vector<2x1x128xf32>
      tpu.vector_store %arg11[%c0_35, %c0_36, %c0_37], %59 {strides = array<i32>} : memref<2x1x128xf32, #tpu.memory_space<vmem>>, vector<2x1x128xf32>,
      %cst_38 = arith.constant 0.000000e+00 : f32
      %61 = vector.broadcast %cst_38 : f32 to vector<2x1x128xf32>
      %c0_39 = arith.constant 0 : index
      %c0_40 = arith.constant 0 : index
      %c0_41 = arith.constant 0 : index
      %62 = vector.load %arg12[%c0_39, %c0_40, %c0_41] : memref<2x1x128xf32, #tpu.memory_space<vmem>>, vector<2x1x128xf32>
      tpu.vector_store %arg12[%c0_39, %c0_40, %c0_41], %61 {strides = array<i32>} : memref<2x1x128xf32, #tpu.memory_space<vmem>>, vector<2x1x128xf32>,
      %cst_42 = arith.constant 0.000000e+00 : f32
      %63 = vector.broadcast %cst_42 : f32 to vector<1x1xf32>
      %c0_43 = arith.constant 0 : index
      %c0_44 = arith.constant 0 : index
      %64 = vector.load %arg13[%c0_43, %c0_44] : memref<1x1xf32, #tpu.memory_space<vmem>>, vector<1x1xf32>
      tpu.vector_store %arg13[%c0_43, %c0_44], %63 {strides = array<i32>} : memref<1x1xf32, #tpu.memory_space<vmem>>, vector<1x1xf32>,
    } else {
    }
    %c0 = arith.constant 0 : index
    %c0_4 = arith.constant 0 : index
    %8 = vector.load %arg2[%c0, %c0_4] : memref<128x128xf32, #tpu.memory_space<vmem>>, vector<128x128xf32>
    %c0_5 = arith.constant 0 : index
    %c0_6 = arith.constant 0 : index
    %9 = vector.load %arg3[%c0_5, %c0_6] : memref<128x128xf32, #tpu.memory_space<vmem>>, vector<128x128xf32>
    %cst = arith.constant dense<0.000000e+00> : vector<128x128xf32>
    %10 = tpu.matmul %8, %9, %cst {dimension_numbers = #tpu.dot_dimension_numbers<[1], [1], [0], [0], [0, 0, 1, 0], [], []>} : vector<128x128xf32>, vector<128x128xf32>, vector<128x128xf32> -> vector<128x128xf32>
    %c0_7 = arith.constant 0 : index
    %c0_8 = arith.constant 0 : index
    %11 = vector.load %arg4[%c0_7, %c0_8] : memref<128x1xf32, #tpu.memory_space<vmem>>, vector<128x1xf32>
    %c0_9 = arith.constant 0 : index
    %c0_10 = arith.constant 0 : index
    %12 = vector.load %arg9[%c0_9, %c0_10] : memref<128x1xf32, #tpu.memory_space<vmem>>, vector<128x1xf32>
    %cst_11 = arith.constant dense<0xFF800000> : vector<128xf32>
    %13 = vector.multi_reduction <maximumf>, %10, %cst_11 [1] : vector<128x128xf32> to vector<128xf32>
    %14 = vector.shape_cast %13 : vector<128xf32> to vector<128x1xf32>
    %15 = arith.maximumf %12, %14 : vector<128x1xf32>
    %16 = vector.broadcast %15 : vector<128x1xf32> to vector<128x128xf32>
    %17 = arith.subf %10, %16 : vector<128x128xf32>
    %18 = math.exp %17 : vector<128x128xf32>
    %cst_12 = arith.constant dense<0.000000e+00> : vector<128x1xf32>
    %19 = tpu.matmul %18, %11, %cst_12 {dimension_numbers = #tpu.dot_dimension_numbers<[1], [0], [0], [1], [0, 0, 1, 1], [], []>} : vector<128x128xf32>, vector<128x1xf32>, vector<128x1xf32> -> vector<128x1xf32>
    %c0_13 = arith.constant 0 : index
    %c0_14 = arith.constant 0 : index
    %20 = vector.load %arg10[%c0_13, %c0_14] : memref<128x1xf32, #tpu.memory_space<vmem>>, vector<128x1xf32>
    %21 = arith.subf %12, %15 : vector<128x1xf32>
    %22 = math.exp %21 : vector<128x1xf32>
    %23 = arith.mulf %20, %22 : vector<128x1xf32>
    %24 = arith.addf %23, %19 : vector<128x1xf32>
    %c0_15 = arith.constant 0 : index
    %c0_16 = arith.constant 0 : index
    %25 = vector.load %arg10[%c0_15, %c0_16] : memref<128x1xf32, #tpu.memory_space<vmem>>, vector<128x1xf32>
    tpu.vector_store %arg10[%c0_15, %c0_16], %24 {strides = array<i32>} : memref<128x1xf32, #tpu.memory_space<vmem>>, vector<128x1xf32>,
    %c0_17 = arith.constant 0 : index
    %c0_18 = arith.constant 0 : index
    %26 = vector.load %arg9[%c0_17, %c0_18] : memref<128x1xf32, #tpu.memory_space<vmem>>, vector<128x1xf32>
    tpu.vector_store %arg9[%c0_17, %c0_18], %15 {strides = array<i32>} : memref<128x1xf32, #tpu.memory_space<vmem>>, vector<128x1xf32>,
    %c0_19 = arith.constant 0 : index
    %c0_20 = arith.constant 0 : index
    %27 = vector.load %arg5[%c0_19, %c0_20] : memref<1x128xf32, #tpu.memory_space<vmem>>, vector<1x128xf32>
    %28 = arith.index_cast %arg1 : i32 to index
    %c0_21 = arith.constant 0 : index
    %c0_22 = arith.constant 0 : index
    %29 = vector.load %arg11[%28, %c0_21, %c0_22] : memref<2x1x128xf32, #tpu.memory_space<vmem>>, vector<1x1x128xf32>
    %30 = vector.shape_cast %29 : vector<1x1x128xf32> to vector<1x128xf32>
    %cst_23 = arith.constant dense<0xFF800000> : vector<128xf32>
    %31 = vector.multi_reduction <maximumf>, %10, %cst_23 [0] : vector<128x128xf32> to vector<128xf32>
    %32 = vector.shape_cast %31 : vector<128xf32> to vector<1x128xf32>
    %33 = arith.maximumf %30, %32 : vector<1x128xf32>
    %34 = vector.broadcast %33 : vector<1x128xf32> to vector<128x128xf32>
    %35 = arith.subf %10, %34 : vector<128x128xf32>
    %36 = math.exp %35 : vector<128x128xf32>
    %cst_24 = arith.constant dense<0.000000e+00> : vector<1x128xf32>
    %37 = tpu.matmul %27, %36, %cst_24 {dimension_numbers = #tpu.dot_dimension_numbers<[1], [0], [0], [1], [0, 0, 1, 1], [], []>} : vector<1x128xf32>, vector<128x128xf32>, vector<1x128xf32> -> vector<1x128xf32>
    %38 = arith.index_cast %arg1 : i32 to index
    %c0_25 = arith.constant 0 : index
    %c0_26 = arith.constant 0 : index
    %39 = vector.load %arg12[%38, %c0_25, %c0_26] : memref<2x1x128xf32, #tpu.memory_space<vmem>>, vector<1x1x128xf32>
    %40 = vector.shape_cast %39 : vector<1x1x128xf32> to vector<1x128xf32>
    %41 = arith.subf %30, %33 : vector<1x128xf32>
    %42 = math.exp %41 : vector<1x128xf32>
    %43 = arith.mulf %40, %42 : vector<1x128xf32>
    %44 = arith.addf %43, %37 : vector<1x128xf32>
    %45 = arith.index_cast %arg1 : i32 to index
    %c0_27 = arith.constant 0 : index
    %c0_28 = arith.constant 0 : index
    %46 = vector.load %arg12[%45, %c0_27, %c0_28] : memref<2x1x128xf32, #tpu.memory_space<vmem>>, vector<1x1x128xf32>
    %47 = vector.shape_cast %46 : vector<1x1x128xf32> to vector<1x128xf32>
    %48 = vector.shape_cast %44 : vector<1x128xf32> to vector<1x1x128xf32>
    tpu.vector_store %arg12[%45, %c0_27, %c0_28], %48 {strides = array<i32>} : memref<2x1x128xf32, #tpu.memory_space<vmem>>, vector<1x1x128xf32>,
    %49 = arith.index_cast %arg1 : i32 to index
    %c0_29 = arith.constant 0 : index
    %c0_30 = arith.constant 0 : index
    %50 = vector.load %arg11[%49, %c0_29, %c0_30] : memref<2x1x128xf32, #tpu.memory_space<vmem>>, vector<1x1x128xf32>
    %51 = vector.shape_cast %50 : vector<1x1x128xf32> to vector<1x128xf32>
    %52 = vector.shape_cast %33 : vector<1x128xf32> to vector<1x1x128xf32>
    tpu.vector_store %arg11[%49, %c0_29, %c0_30], %52 {strides = array<i32>} : memref<2x1x128xf32, #tpu.memory_space<vmem>>, vector<1x1x128xf32>,
    %c1_i32 = arith.constant 1 : i32
    %53 = arith.cmpi eq, %arg0, %c1_i32 : i32
    %54 = arith.extui %53 : i1 to i32
    %c0_i32_31 = arith.constant 0 : i32
    %55 = arith.cmpi ne, %54, %c0_i32_31 : i32
    scf.if %55 {
      %c0_34 = arith.constant 0 : index
      %c0_35 = arith.constant 0 : index
      %59 = vector.load %arg7[%c0_34, %c0_35] : memref<3x128xf32, #tpu.memory_space<vmem>>, vector<3x128xf32>
      %60 = vector.extract_strided_slice %59 {offsets = [0, 0], sizes = [1, 128], strides = [1, 1]} : vector<3x128xf32> to vector<1x128xf32>
      %61 = vector.extract_strided_slice %59 {offsets = [1, 0], sizes = [1, 128], strides = [1, 1]} : vector<3x128xf32> to vector<1x128xf32>
      %62 = vector.extract_strided_slice %59 {offsets = [2, 0], sizes = [1, 128], strides = [1, 1]} : vector<3x128xf32> to vector<1x128xf32>
      %63 = arith.index_cast %arg1 : i32 to index
      %c0_36 = arith.constant 0 : index
      %c0_37 = arith.constant 0 : index
      %64 = vector.load %arg11[%63, %c0_36, %c0_37] : memref<2x1x128xf32, #tpu.memory_space<vmem>>, vector<1x1x128xf32>
      %65 = vector.shape_cast %64 : vector<1x1x128xf32> to vector<1x128xf32>
      %66 = arith.index_cast %arg1 : i32 to index
      %c0_38 = arith.constant 0 : index
      %c0_39 = arith.constant 0 : index
      %67 = vector.load %arg12[%66, %c0_38, %c0_39] : memref<2x1x128xf32, #tpu.memory_space<vmem>>, vector<1x1x128xf32>
      %68 = vector.shape_cast %67 : vector<1x1x128xf32> to vector<1x128xf32>
      %cst_40 = arith.constant 1.000000e-30 : f32
      %69 = vector.broadcast %cst_40 : f32 to vector<1x128xf32>
      %70 = arith.maximumf %68, %69 : vector<1x128xf32>
      %71 = math.log %70 : vector<1x128xf32>
      %72 = arith.addf %65, %71 : vector<1x128xf32>
      %73 = arith.subf %62, %72 : vector<1x128xf32>
      %74 = arith.mulf %60, %73 : vector<1x128xf32>
      %75 = arith.addf %61, %74 : vector<1x128xf32>
      %76 = vector.shape_cast %75 : vector<1x128xf32> to vector<1x1x128xf32>
      %cst_41 = arith.constant dense<0.000000e+00> : vector<1xf32>
      %77 = vector.multi_reduction <add>, %76, %cst_41 [1, 2] : vector<1x1x128xf32> to vector<1xf32>
      %78 = vector.shape_cast %77 : vector<1xf32> to vector<1x1x1xf32>
      %79 = vector.extract %78[0, 0, 0] : f32 from vector<1x1x1xf32>
      %80 = vector.broadcast %79 : f32 to vector<1x1xf32>
      %cst_42 = arith.constant 0.000000e+00 : f32
      %81 = vector.broadcast %cst_42 : f32 to vector<1x1xf32>
      %82 = arith.subf %81, %80 : vector<1x1xf32>
      %c0_i32_43 = arith.constant 0 : i32
      %83 = arith.cmpi eq, %arg1, %c0_i32_43 : i32
      %c0_44 = arith.constant 0 : index
      %c0_45 = arith.constant 0 : index
      %84 = vector.load %arg13[%c0_44, %c0_45] : memref<1x1xf32, #tpu.memory_space<vmem>>, vector<1x1xf32>
      %cst_46 = arith.constant 0.000000e+00 : f32
      %85 = vector.broadcast %cst_46 : f32 to vector<1x1xf32>
      %86 = arith.select %83, %85, %84 : vector<1x1xf32>
      %87 = arith.addf %86, %82 : vector<1x1xf32>
      %c0_47 = arith.constant 0 : index
      %c0_48 = arith.constant 0 : index
      %88 = vector.load %arg13[%c0_47, %c0_48] : memref<1x1xf32, #tpu.memory_space<vmem>>, vector<1x1xf32>
      tpu.vector_store %arg13[%c0_47, %c0_48], %87 {strides = array<i32>} : memref<1x1xf32, #tpu.memory_space<vmem>>, vector<1x1xf32>,
    } else {
    }
    %c1_i32_32 = arith.constant 1 : i32
    %56 = arith.cmpi eq, %arg1, %c1_i32_32 : i32
    %57 = arith.extui %56 : i1 to i32
    %c0_i32_33 = arith.constant 0 : i32
    %58 = arith.cmpi ne, %57, %c0_i32_33 : i32
    scf.if %58 {
      %c0_34 = arith.constant 0 : index
      %c0_35 = arith.constant 0 : index
      %59 = vector.load %arg6[%c0_34, %c0_35] : memref<128x3xf32, #tpu.memory_space<vmem>>, vector<128x3xf32>
      %60 = vector.extract_strided_slice %59 {offsets = [0, 0], sizes = [128, 1], strides = [1, 1]} : vector<128x3xf32> to vector<128x1xf32>
      %61 = vector.extract_strided_slice %59 {offsets = [0, 1], sizes = [128, 1], strides = [1, 1]} : vector<128x3xf32> to vector<128x1xf32>
      %62 = vector.extract_strided_slice %59 {offsets = [0, 2], sizes = [128, 1], strides = [1, 1]} : vector<128x3xf32> to vector<128x1xf32>
      %c0_36 = arith.constant 0 : index
      %c0_37 = arith.constant 0 : index
      %63 = vector.load %arg9[%c0_36, %c0_37] : memref<128x1xf32, #tpu.memory_space<vmem>>, vector<128x1xf32>
      %c0_38 = arith.constant 0 : index
      %c0_39 = arith.constant 0 : index
      %64 = vector.load %arg10[%c0_38, %c0_39] : memref<128x1xf32, #tpu.memory_space<vmem>>, vector<128x1xf32>
      %cst_40 = arith.constant 1.000000e-30 : f32
      %65 = vector.broadcast %cst_40 : f32 to vector<128x1xf32>
      %66 = arith.maximumf %64, %65 : vector<128x1xf32>
      %67 = math.log %66 : vector<128x1xf32>
      %68 = arith.addf %63, %67 : vector<128x1xf32>
      %69 = arith.subf %62, %68 : vector<128x1xf32>
      %70 = arith.mulf %60, %69 : vector<128x1xf32>
      %71 = arith.addf %61, %70 : vector<128x1xf32>
      %72 = vector.shape_cast %71 : vector<128x1xf32> to vector<1x128x1xf32>
      %cst_41 = arith.constant dense<0.000000e+00> : vector<1xf32>
      %73 = vector.multi_reduction <add>, %72, %cst_41 [1, 2] : vector<1x128x1xf32> to vector<1xf32>
      %74 = vector.shape_cast %73 : vector<1xf32> to vector<1x1x1xf32>
      %75 = vector.extract %74[0, 0, 0] : f32 from vector<1x1x1xf32>
      %76 = vector.broadcast %75 : f32 to vector<1x1xf32>
      %cst_42 = arith.constant 0.000000e+00 : f32
      %77 = vector.broadcast %cst_42 : f32 to vector<1x1xf32>
      %78 = arith.subf %77, %76 : vector<1x1xf32>
      %c1_i32_43 = arith.constant 1 : i32
      %79 = arith.cmpi eq, %arg0, %c1_i32_43 : i32
      %c0_44 = arith.constant 0 : index
      %c0_45 = arith.constant 0 : index
      %80 = vector.load %arg13[%c0_44, %c0_45] : memref<1x1xf32, #tpu.memory_space<vmem>>, vector<1x1xf32>
      %cst_46 = arith.constant 0.000000e+00 : f32
      %81 = vector.broadcast %cst_46 : f32 to vector<1x1xf32>
      %82 = arith.select %79, %80, %81 : vector<1x1xf32>
      %83 = arith.addf %78, %82 : vector<1x1xf32>
      %84 = vector.shape_cast %83 : vector<1x1xf32> to vector<1x1xf32>
      %85 = vector.broadcast %84 : vector<1x1xf32> to vector<8x128xf32>
      %c0_47 = arith.constant 0 : index
      %c0_48 = arith.constant 0 : index
      %86 = vector.load %arg8[%c0_47, %c0_48] : memref<8x128xf32, #tpu.memory_space<vmem>>, vector<8x128xf32>
      tpu.vector_store %arg8[%c0_47, %c0_48], %85 {strides = array<i32>} : memref<8x128xf32, #tpu.memory_space<vmem>>, vector<8x128xf32>,
    } else {
    }
    return
  }
  func.func @transform_0(%arg0: i32, %arg1: i32) -> (i32, i32) {
    %c0_i32 = arith.constant 0 : i32
    %c0_i32_0 = arith.constant 0 : i32
    return %arg0, %c0_i32 : i32, i32
  }
  func.func @transform_1(%arg0: i32, %arg1: i32) -> (i32, i32) {
    %c0_i32 = arith.constant 0 : i32
    %c0_i32_0 = arith.constant 0 : i32
    return %arg1, %c0_i32 : i32, i32
  }
  func.func @transform_2(%arg0: i32, %arg1: i32) -> (i32, i32) {
    %c0_i32 = arith.constant 0 : i32
    %c0_i32_0 = arith.constant 0 : i32
    return %arg1, %c0_i32 : i32, i32
  }
  func.func @transform_3(%arg0: i32, %arg1: i32) -> (i32, i32) {
    %c0_i32 = arith.constant 0 : i32
    %c0_i32_0 = arith.constant 0 : i32
    return %c0_i32, %arg0 : i32, i32
  }
  func.func @transform_4(%arg0: i32, %arg1: i32) -> (i32, i32) {
    %c0_i32 = arith.constant 0 : i32
    %c0_i32_0 = arith.constant 0 : i32
    return %arg0, %c0_i32 : i32, i32
  }
  func.func @transform_5(%arg0: i32, %arg1: i32) -> (i32, i32) {
    %c0_i32 = arith.constant 0 : i32
    %c0_i32_0 = arith.constant 0 : i32
    return %c0_i32, %arg1 : i32, i32
  }
  func.func @transform_6(%arg0: i32, %arg1: i32) -> (i32, i32) {
    %c0_i32 = arith.constant 0 : i32
    %c0_i32_0 = arith.constant 0 : i32
    return %arg0, %c0_i32 : i32, i32
  }
}

</mosaic_0001>

<llo_original>
// kernel: negative_weighted_clip_loss.1
$region0: #{negative_weighted_clip_loss.1}
  #allocation0 [shape = 'u32[]', space=smem, size = 0x4, offset = 0x4, fixed_abs, tag = 'smem constant byte address 0x4 - core index']
  #allocation1 [shape = 'u32[72,128]{1,0:T(1,128)}', space=vmem, size = 0x9000, scoped, tag = 'internal scratch']
  #allocation2 [shape = 'f32[128,1]{1,0:T(8,128)}', space=vmem, size = 0x10000, scoped, tag = 'scratch operand']
  #allocation3 [shape = 'f32[128,1]{1,0:T(8,128)}', space=vmem, size = 0x10000, scoped, tag = 'scratch operand']
  #allocation4 [shape = 'f32[2,1,128]{2,1,0:T(1,128)}', space=vmem, size = 0x400, scoped, tag = 'scratch operand']
  #allocation5 [shape = 'f32[2,1,128]{2,1,0:T(1,128)}', space=vmem, size = 0x400, scoped, tag = 'scratch operand']
  #allocation6 [shape = 'f32[1,1]{1,0:T(1,128)}', space=vmem, size = 0x200, scoped, tag = 'scratch operand']
  %s0 = inlined_call_operand.vmem [shape: f32[256,128], index: 0, kind: input, shape index: {}]
  %s1 = inlined_call_operand.vmem [shape: f32[256,128], index: 1, kind: input, shape index: {}]
  %s2 = inlined_call_operand.vmem [shape: f32[256,1], index: 2, kind: input, shape index: {}]
  %s3 = inlined_call_operand.vmem [shape: f32[1,256], index: 3, kind: input, shape index: {}]
  %s4 = inlined_call_operand.vmem [shape: f32[256,3], index: 4, kind: input, shape index: {}]
  %s5 = inlined_call_operand.vmem [shape: f32[3,256], index: 5, kind: input, shape index: {}]
  %s6 = inlined_call_operand.vmem [shape: f32[16,128], index: 6, kind: output, shape index: {}]
  %s7 = sld [smem:[#allocation0]]
  $region73: #{negative_weighted_clip_loss.1} parent=0
    _
  %s9 = ssub.s32 1, %s7
  %s10 = scalar_select 0, %s9, %s7
  loop: start=0, step=1, limit=6
  $region2: #{negative_weighted_clip_loss.1} parent=0 // loop_pre_header
    _
  $region3: #{negative_weighted_clip_loss.1} parent=0 // loop_header
    %s12 = sphi 0, %s16
    %p13 = scmp.ge.s32.totalorder %s12, 6
    %s19 = sphi 0, %s31
    %s20 = sphi 0, %s27
    %s21 = sphi 0, %s19
    %s22 = sphi 0, %s20
    %s23 = sphi 0, %s21
    %s24 = sphi 0, %s22
    %s34 = sphi 0, %s36
    %s37 = sphi 0, %s34
    %s38 = sphi 0, %s37
    %s54 = sphi 0, %s38
    %s60 = sphi 0, %s62
    %s63 = sphi 0, %s60
    %s64 = sphi 0, %s63
    %s80 = sphi 0, %s64
    %s86 = sphi 0, %s88
    %s89 = sphi 0, %s86
    %s90 = sphi 0, %s89
    %s106 = sphi 0, %s90
    %s112 = sphi 0, %s114
    %s115 = sphi 0, %s112
    %s116 = sphi 0, %s115
    %s132 = sphi 0, %s116
    %s138 = sphi 0, %s140
    %s141 = sphi 0, %s138
    %s142 = sphi 0, %s141
    %s158 = sphi 0, %s142
    %s164 = sphi 0, %s166
    %s167 = sphi 0, %s164
    %s168 = sphi 0, %s167
    %s184 = sphi 0, %s168
    %s190 = sphi 0, %s192
    %s193 = sphi 0, %s190
    %s194 = sphi 0, %s193
    %s210 = sphi 0, %s194
  $region4: #{negative_weighted_clip_loss.1} parent=0 // loop_header_branch
    %15 = sbr.rel (%p13) target = $region8
  $region5: #{negative_weighted_clip_loss.1} parent=0 // loop_body
    %s17 = ssub.s32 %s12, 1
    %s18 = ssub.s32 %s12, 2
    %s25 = sadd.s32 1, %s20
    %p26 = scmp.ge.s32.totalorder %s25, 2
    %s27 = scalar_select %p26, 0, %s25
    %s28 = sadd.s32 1, %s19
    %s29 = scalar_select %p26, %s28, %s19
    %p30 = scmp.ge.s32.totalorder %s29, 2
    %s31 = scalar_select %p30, 0, %s29
    %s32 = ssub.s32 %s19, %s31
    %p33 = scmp.eq.s32.totalorder %s32, 0
    %s35 = sadd.s32 %s34, 1
    %s36 = scalar_select %p33, %s34, %s35
    %p39 = pneg %p33
    %p40 = scmp.eq.s32.totalorder %s12, 3
    %p41 = por %p39, %p40
    %p42 = scmp.ne.s32.totalorder %s34, %s37
    %p43 = scmp.eq.s32.totalorder %s12, 0
    %p44 = por %p42, %p43
    %p45 = scmp.ne.s32.totalorder %s34, %s37
    %p46 = scmp.eq.s32.totalorder %s17, 3
    %p47 = por %p45, %p46
    %p48 = scmp.ne.s32.totalorder %s37, %s38
    %p49 = scmp.eq.s32.totalorder %s17, 0
    %p50 = por %p48, %p49
    %p51 = scmp.ne.s32.totalorder %s37, %s38
    %p52 = scmp.eq.s32.totalorder %s18, 3
    %p53 = por %p51, %p52
    %p55 = scmp.ne.s32.totalorder %s38, %s54
    %p56 = scmp.eq.s32.totalorder %s18, 0
    %p57 = por %p55, %p56
    %s58 = ssub.s32 %s20, %s27
    %p59 = scmp.eq.s32.totalorder %s58, 0
    %s61 = sadd.s32 %s60, 1
    %s62 = scalar_select %p59, %s60, %s61
    %p65 = pneg %p59
    %p66 = scmp.eq.s32.totalorder %s12, 3
    %p67 = por %p65, %p66
    %p68 = scmp.ne.s32.totalorder %s60, %s63
    %p69 = scmp.eq.s32.totalorder %s12, 0
    %p70 = por %p68, %p69
    %p71 = scmp.ne.s32.totalorder %s60, %s63
    %p72 = scmp.eq.s32.totalorder %s17, 3
    %p73 = por %p71, %p72
    %p74 = scmp.ne.s32.totalorder %s63, %s64
    %p75 = scmp.eq.s32.totalorder %s17, 0
    %p76 = por %p74, %p75
    %p77 = scmp.ne.s32.totalorder %s63, %s64
    %p78 = scmp.eq.s32.totalorder %s18, 3
    %p79 = por %p77, %p78
    %p81 = scmp.ne.s32.totalorder %s64, %s80
    %p82 = scmp.eq.s32.totalorder %s18, 0
    %p83 = por %p81, %p82
    %s84 = ssub.s32 %s20, %s27
    %p85 = scmp.eq.s32.totalorder %s84, 0
    %s87 = sadd.s32 %s86, 1
    %s88 = scalar_select %p85, %s86, %s87
    %p91 = pneg %p85
    %p92 = scmp.eq.s32.totalorder %s12, 3
    %p93 = por %p91, %p92
    %p94 = scmp.ne.s32.totalorder %s86, %s89
    %p95 = scmp.eq.s32.totalorder %s12, 0
    %p96 = por %p94, %p95
    %p97 = scmp.ne.s32.totalorder %s86, %s89
    %p98 = scmp.eq.s32.totalorder %s17, 3
    %p99 = por %p97, %p98
    %p100 = scmp.ne.s32.totalorder %s89, %s90
    %p101 = scmp.eq.s32.totalorder %s17, 0
    %p102 = por %p100, %p101
    %p103 = scmp.ne.s32.totalorder %s89, %s90
    %p104 = scmp.eq.s32.totalorder %s18, 3
    %p105 = por %p103, %p104
    %p107 = scmp.ne.s32.totalorder %s90, %s106
    %p108 = scmp.eq.s32.totalorder %s18, 0
    %p109 = por %p107, %p108
    %s110 = ssub.s32 %s19, %s31
    %p111 = scmp.eq.s32.totalorder %s110, 0
    %s113 = sadd.s32 %s112, 1
    %s114 = scalar_select %p111, %s112, %s113
    %p117 = pneg %p111
    %p118 = scmp.eq.s32.totalorder %s12, 3
    %p119 = por %p117, %p118
    %p120 = scmp.ne.s32.totalorder %s112, %s115
    %p121 = scmp.eq.s32.totalorder %s12, 0
    %p122 = por %p120, %p121
    %p123 = scmp.ne.s32.totalorder %s112, %s115
    %p124 = scmp.eq.s32.totalorder %s17, 3
    %p125 = por %p123, %p124
    %p126 = scmp.ne.s32.totalorder %s115, %s116
    %p127 = scmp.eq.s32.totalorder %s17, 0
    %p128 = por %p126, %p127
    %p129 = scmp.ne.s32.totalorder %s115, %s116
    %p130 = scmp.eq.s32.totalorder %s18, 3
    %p131 = por %p129, %p130
    %p133 = scmp.ne.s32.totalorder %s116, %s132
    %p134 = scmp.eq.s32.totalorder %s18, 0
    %p135 = por %p133, %p134
    %s136 = ssub.s32 %s19, %s31
    %p137 = scmp.eq.s32.totalorder %s136, 0
    %s139 = sadd.s32 %s138, 1
    %s140 = scalar_select %p137, %s138, %s139
    %p143 = pneg %p137
    %p144 = scmp.eq.s32.totalorder %s12, 3
    %p145 = por %p143, %p144
    %p146 = scmp.ne.s32.totalorder %s138, %s141
    %p147 = scmp.eq.s32.totalorder %s12, 0
    %p148 = por %p146, %p147
    %p149 = scmp.ne.s32.totalorder %s138, %s141
    %p150 = scmp.eq.s32.totalorder %s17, 3
    %p151 = por %p149, %p150
    %p152 = scmp.ne.s32.totalorder %s141, %s142
    %p153 = scmp.eq.s32.totalorder %s17, 0
    %p154 = por %p152, %p153
    %p155 = scmp.ne.s32.totalorder %s141, %s142
    %p156 = scmp.eq.s32.totalorder %s18, 3
    %p157 = por %p155, %p156
    %p159 = scmp.ne.s32.totalorder %s142, %s158
    %p160 = scmp.eq.s32.totalorder %s18, 0
    %p161 = por %p159, %p160
    %s162 = ssub.s32 %s20, %s27
    %p163 = scmp.eq.s32.totalorder %s162, 0
    %s165 = sadd.s32 %s164, 1
    %s166 = scalar_select %p163, %s164, %s165
    %p169 = pneg %p163
    %p170 = scmp.eq.s32.totalorder %s12, 3
    %p171 = por %p169, %p170
    %p172 = scmp.ne.s32.totalorder %s164, %s167
    %p173 = scmp.eq.s32.totalorder %s12, 0
    %p174 = por %p172, %p173
    %p175 = scmp.ne.s32.totalorder %s164, %s167
    %p176 = scmp.eq.s32.totalorder %s17, 3
    %p177 = por %p175, %p176
    %p178 = scmp.ne.s32.totalorder %s167, %s168
    %p179 = scmp.eq.s32.totalorder %s17, 0
    %p180 = por %p178, %p179
    %p181 = scmp.ne.s32.totalorder %s167, %s168
    %p182 = scmp.eq.s32.totalorder %s18, 3
    %p183 = por %p181, %p182
    %p185 = scmp.ne.s32.totalorder %s168, %s184
    %p186 = scmp.eq.s32.totalorder %s18, 0
    %p187 = por %p185, %p186
    %s188 = ssub.s32 %s19, %s31
    %p189 = scmp.eq.s32.totalorder %s188, 0
    %s191 = sadd.s32 %s190, 1
    %s192 = scalar_select %p189, %s190, %s191
    %p195 = pneg %p189
    %p196 = scmp.eq.s32.totalorder %s12, 3
    %p197 = por %p195, %p196
    %p198 = scmp.ne.s32.totalorder %s190, %s193
    %p199 = scmp.eq.s32.totalorder %s12, 0
    %p200 = por %p198, %p199
    %p201 = scmp.ne.s32.totalorder %s190, %s193
    %p202 = scmp.eq.s32.totalorder %s17, 3
    %p203 = por %p201, %p202
    %p204 = scmp.ne.s32.totalorder %s193, %s194
    %p205 = scmp.eq.s32.totalorder %s17, 0
    %p206 = por %p204, %p205
    %p207 = scmp.ne.s32.totalorder %s193, %s194
    %p208 = scmp.eq.s32.totalorder %s18, 3
    %p209 = por %p207, %p208
    %p211 = scmp.ne.s32.totalorder %s194, %s210
    %p212 = scmp.eq.s32.totalorder %s18, 0
    %p213 = por %p211, %p212
    %p214 = scmp.le.s32.totalorder 1, %s12
    %p215 = scmp.lt.s32.totalorder %s12, 5
    %p216 = pnand %p214, %p215
    %p217 = pneg %p216
    // Predicated region
    $region9: #{negative_weighted_clip_loss.1} parent=5 // pred_check
      _
    $region10: #{negative_weighted_clip_loss.1} parent=5 // pred_check_branch
      %219 = sbr.rel (%p216) target = $region12
    $region11: #{negative_weighted_clip_loss.1} parent=5 // pred_region
      %s220 = ssub.s32 %s12, 1
    $region12: #{negative_weighted_clip_loss.1} parent=5 // pred_fallthru
      _
    %p221 = scmp.lt.s32.totalorder %s12, 4
    // Predicated region
    $region13: #{negative_weighted_clip_loss.1} parent=5 // pred_check
      %p222 = pneg %p221
    $region14: #{negative_weighted_clip_loss.1} parent=5 // pred_check_branch
      %224 = sbr.rel (%p222) target = $region16
    $region15: #{negative_weighted_clip_loss.1} parent=5 // pred_region
      // Predicated region
      $region17: #{negative_weighted_clip_loss.1} parent=15 // pred_check
        %p225 = pneg %p44
      $region18: #{negative_weighted_clip_loss.1} parent=15 // pred_check_branch
        %227 = sbr.rel (%p225) target = $region20
      $region19: #{negative_weighted_clip_loss.1} parent=15 // pred_region
        %s228 = smul.u32 16, %s19
        %p229 = scmp.lt.s32.totalorder %s228, 31
        %s230 = scalar_select %p229, %s228, 31
        %s231 = smul.addr %s230, 8
        %s232 = scalar_lea.vmem %s0, %s231
        %s233 = smul.u32 16, %s19
      $region20: #{negative_weighted_clip_loss.1} parent=15 // pred_fallthru
        _
      // Predicated region
      $region21: #{negative_weighted_clip_loss.1} parent=15 // pred_check
        %p234 = pneg %p70
      $region22: #{negative_weighted_clip_loss.1} parent=15 // pred_check_branch
        %236 = sbr.rel (%p234) target = $region24
      $region23: #{negative_weighted_clip_loss.1} parent=15 // pred_region
        %s237 = smul.u32 16, %s20
        %p238 = scmp.lt.s32.totalorder %s237, 31
        %s239 = scalar_select %p238, %s237, 31
        %s240 = smul.addr %s239, 8
        %s241 = scalar_lea.vmem %s1, %s240
        %s242 = smul.u32 16, %s20
      $region24: #{negative_weighted_clip_loss.1} parent=15 // pred_fallthru
        _
      // Predicated region
      $region25: #{negative_weighted_clip_loss.1} parent=15 // pred_check
        %p243 = pneg %p96
      $region26: #{negative_weighted_clip_loss.1} parent=15 // pred_check_branch
        %245 = sbr.rel (%p243) target = $region28
      $region27: #{negative_weighted_clip_loss.1} parent=15 // pred_region
        %s246 = smul.u32 16, %s20
        %p247 = scmp.lt.s32.totalorder %s246, 31
        %s248 = scalar_select %p247, %s246, 31
        %s249 = smul.addr %s248, 8
        %s250 = scalar_lea.vmem %s2, %s249
        %s251 = smul.u32 16, %s20
      $region28: #{negative_weighted_clip_loss.1} parent=15 // pred_fallthru
        _
      // Predicated region
      $region29: #{negative_weighted_clip_loss.1} parent=15 // pred_check
        %p252 = pneg %p122
      $region30: #{negative_weighted_clip_loss.1} parent=15 // pred_check_branch
        %254 = sbr.rel (%p252) target = $region32
      $region31: #{negative_weighted_clip_loss.1} parent=15 // pred_region
        %p255 = scmp.lt.s32.totalorder %s19, 1
        %s256 = scalar_select %p255, %s19, 1
        %s257 = scalar_lea.vmem %s3, %s256
      $region32: #{negative_weighted_clip_loss.1} parent=15 // pred_fallthru
        _
      // Predicated region
      $region33: #{negative_weighted_clip_loss.1} parent=15 // pred_check
        %p258 = pneg %p148
      $region34: #{negative_weighted_clip_loss.1} parent=15 // pred_check_branch
        %260 = sbr.rel (%p258) target = $region36
      $region35: #{negative_weighted_clip_loss.1} parent=15 // pred_region
        %s261 = smul.u32 16, %s19
        %p262 = scmp.lt.s32.totalorder %s261, 31
        %s263 = scalar_select %p262, %s261, 31
        %s264 = smul.addr %s263, 8
        %s265 = scalar_lea.vmem %s4, %s264
        %s266 = smul.u32 16, %s19
      $region36: #{negative_weighted_clip_loss.1} parent=15 // pred_fallthru
        _
      // Predicated region
      $region37: #{negative_weighted_clip_loss.1} parent=15 // pred_check
        %p267 = pneg %p174
      $region38: #{negative_weighted_clip_loss.1} parent=15 // pred_check_branch
        %269 = sbr.rel (%p267) target = $region40
      $region39: #{negative_weighted_clip_loss.1} parent=15 // pred_region
        %p270 = scmp.lt.s32.totalorder %s20, 1
        %s271 = scalar_select %p270, %s20, 1
        %s272 = smul.addr %s271, 4
        %s273 = scalar_lea.vmem %s5, %s272
      $region40: #{negative_weighted_clip_loss.1} parent=15 // pred_fallthru
        _
    $region16: #{negative_weighted_clip_loss.1} parent=5 // pred_fallthru
      _
    %p274 = scmp.le.s32.totalorder 1, %s12
    %p275 = scmp.lt.s32.totalorder %s12, 5
    %p276 = pnand %p274, %p275
    %p277 = pneg %p276
    // Predicated region
    $region41: #{negative_weighted_clip_loss.1} parent=5 // pred_check
      _
    $region42: #{negative_weighted_clip_loss.1} parent=5 // pred_check_branch
      %279 = sbr.rel (%p276) target = $region44
    $region43: #{negative_weighted_clip_loss.1} parent=5 // pred_region
      %s280 = ssub.s32 %s12, 1
      %s281 = smul.u32 16, %s21
      %p282 = scmp.lt.s32.totalorder %s281, 31
      %s283 = scalar_select %p282, %s281, 31
      %s284 = smul.addr %s283, 8
      %s285 = scalar_lea.vmem %s0, %s284
      %p286 = pneg %p50
      %p287 = pneg %p47
      %s288 = smul.u32 16, %s22
      %p289 = scmp.lt.s32.totalorder %s288, 31
      %s290 = scalar_select %p289, %s288, 31
      %s291 = smul.addr %s290, 8
      %s292 = scalar_lea.vmem %s1, %s291
      %p293 = pneg %p76
      %p294 = pneg %p73
      %s295 = smul.u32 16, %s22
      %p296 = scmp.lt.s32.totalorder %s295, 31
      %s297 = scalar_select %p296, %s295, 31
      %s298 = smul.addr %s297, 8
      %s299 = scalar_lea.vmem %s2, %s298
      %p300 = pneg %p102
      %p301 = pneg %p99
      %p302 = scmp.lt.s32.totalorder %s21, 1
      %s303 = scalar_select %p302, %s21, 1
      %s304 = scalar_lea.vmem %s3, %s303
      %p305 = pneg %p128
      %p306 = pneg %p125
      %s307 = smul.u32 16, %s21
      %p308 = scmp.lt.s32.totalorder %s307, 31
      %s309 = scalar_select %p308, %s307, 31
      %s310 = smul.addr %s309, 8
      %s311 = scalar_lea.vmem %s4, %s310
      %p312 = pneg %p154
      %p313 = pneg %p151
      %p314 = scmp.lt.s32.totalorder %s22, 1
      %s315 = scalar_select %p314, %s22, 1
      %s316 = smul.addr %s315, 4
      %s317 = scalar_lea.vmem %s5, %s316
      %p318 = pneg %p180
      %p319 = pneg %p177
      %p320 = pneg %p206
      %p321 = pneg %p203
      %p322 = scmp.lt.s32.totalorder %s21, 1
      %s323 = scalar_select %p322, %s21, 1
      %s324 = smul.addr %s323, 8
      %s325 = scalar_lea.vmem %s6, %s324
      %s326 = smul.u32 16, %s21
      %p327 = scmp.lt.s32.totalorder %s326, 31
      %s328 = scalar_select %p327, %s326, 31
      %s329 = smul.addr %s328, 8
      %s330 = scalar_lea.vmem %s0, %s329
      %s331 = smul.u32 16, %s21
      %s332 = smul.u32 16, %s22
      %p333 = scmp.lt.s32.totalorder %s332, 31
      %s334 = scalar_select %p333, %s332, 31
      %s335 = smul.addr %s334, 8
      %s336 = scalar_lea.vmem %s1, %s335
      %s337 = smul.u32 16, %s22
      %s338 = smul.u32 16, %s22
      %p339 = scmp.lt.s32.totalorder %s338, 31
      %s340 = scalar_select %p339, %s338, 31
      %s341 = smul.addr %s340, 8
      %s342 = scalar_lea.vmem %s2, %s341
      %s343 = smul.u32 16, %s22
      %p344 = scmp.lt.s32.totalorder %s21, 1
      %s345 = scalar_select %p344, %s21, 1
      %s346 = scalar_lea.vmem %s3, %s345
      %s347 = smul.u32 16, %s21
      %p348 = scmp.lt.s32.totalorder %s347, 31
      %s349 = scalar_select %p348, %s347, 31
      %s350 = smul.addr %s349, 8
      %s351 = scalar_lea.vmem %s4, %s350
      %s352 = smul.u32 16, %s21
      %p353 = scmp.lt.s32.totalorder %s22, 1
      %s354 = scalar_select %p353, %s22, 1
      %s355 = smul.addr %s354, 4
      %s356 = scalar_lea.vmem %s5, %s355
      %p357 = scmp.lt.s32.totalorder %s21, 1
      %s358 = scalar_select %p357, %s21, 1
      %s359 = smul.addr %s358, 8
      %s360 = scalar_lea.vmem %s6, %s359
      %p361 = scmp.eq.s32.totalorder %s22, 0
      // Predicated region
      $region45: #{negative_weighted_clip_loss.1} parent=43 // pred_check
        %p362 = pneg %p361
      $region46: #{negative_weighted_clip_loss.1} parent=43 // pred_check_branch
        %364 = sbr.rel (%p362) target = $region48
      $region47: #{negative_weighted_clip_loss.1} parent=43 // pred_region
        %vm365 = vcmask 7168
        %366 = vst.msk [vmem:[#allocation2] sm:$0xff] %vm365, -inf
        %367 = vst.msk [vmem:[#allocation2 + $0x8] sm:$0xff] %vm365, -inf
        %368 = vst.msk [vmem:[#allocation2 + $0x10] sm:$0xff] %vm365, -inf
        %369 = vst.msk [vmem:[#allocation2 + $0x18] sm:$0xff] %vm365, -inf
        %370 = vst.msk [vmem:[#allocation2 + $0x20] sm:$0xff] %vm365, -inf
        %371 = vst.msk [vmem:[#allocation2 + $0x28] sm:$0xff] %vm365, -inf
        %372 = vst.msk [vmem:[#allocation2 + $0x30] sm:$0xff] %vm365, -inf
        %373 = vst.msk [vmem:[#allocation2 + $0x38] sm:$0xff] %vm365, -inf
        %374 = vst.msk [vmem:[#allocation2 + $0x40] sm:$0xff] %vm365, -inf
        %375 = vst.msk [vmem:[#allocation2 + $0x48] sm:$0xff] %vm365, -inf
        %376 = vst.msk [vmem:[#allocation2 + $0x50] sm:$0xff] %vm365, -inf
        %377 = vst.msk [vmem:[#allocation2 + $0x58] sm:$0xff] %vm365, -inf
        %378 = vst.msk [vmem:[#allocation2 + $0x60] sm:$0xff] %vm365, -inf
        %379 = vst.msk [vmem:[#allocation2 + $0x68] sm:$0xff] %vm365, -inf
        %380 = vst.msk [vmem:[#allocation2 + $0x70] sm:$0xff] %vm365, -inf
        %381 = vst.msk [vmem:[#allocation2 + $0x78] sm:$0xff] %vm365, -inf
        %382 = vst.msk [vmem:[#allocation3] sm:$0xff] %vm365, 0.0
        %383 = vst.msk [vmem:[#allocation3 + $0x8] sm:$0xff] %vm365, 0.0
        %384 = vst.msk [vmem:[#allocation3 + $0x10] sm:$0xff] %vm365, 0.0
        %385 = vst.msk [vmem:[#allocation3 + $0x18] sm:$0xff] %vm365, 0.0
        %386 = vst.msk [vmem:[#allocation3 + $0x20] sm:$0xff] %vm365, 0.0
        %387 = vst.msk [vmem:[#allocation3 + $0x28] sm:$0xff] %vm365, 0.0
        %388 = vst.msk [vmem:[#allocation3 + $0x30] sm:$0xff] %vm365, 0.0
        %389 = vst.msk [vmem:[#allocation3 + $0x38] sm:$0xff] %vm365, 0.0
        %390 = vst.msk [vmem:[#allocation3 + $0x40] sm:$0xff] %vm365, 0.0
        %391 = vst.msk [vmem:[#allocation3 + $0x48] sm:$0xff] %vm365, 0.0
        %392 = vst.msk [vmem:[#allocation3 + $0x50] sm:$0xff] %vm365, 0.0
        %393 = vst.msk [vmem:[#allocation3 + $0x58] sm:$0xff] %vm365, 0.0
        %394 = vst.msk [vmem:[#allocation3 + $0x60] sm:$0xff] %vm365, 0.0
        %395 = vst.msk [vmem:[#allocation3 + $0x68] sm:$0xff] %vm365, 0.0
        %396 = vst.msk [vmem:[#allocation3 + $0x70] sm:$0xff] %vm365, 0.0
        %397 = vst.msk [vmem:[#allocation3 + $0x78] sm:$0xff] %vm365, 0.0
      $region48: #{negative_weighted_clip_loss.1} parent=43 // pred_fallthru
        _
      %p398 = scmp.eq.s32.totalorder %s21, 0
      %p399 = pnand %p398, %p361
      %p400 = pneg %p399
      // Predicated region
      $region49: #{negative_weighted_clip_loss.1} parent=43 // pred_check
        _
      $region50: #{negative_weighted_clip_loss.1} parent=43 // pred_check_branch
        %402 = sbr.rel (%p399) target = $region52
      $region51: #{negative_weighted_clip_loss.1} parent=43 // pred_region
        %403 = vst [vmem:[#allocation4] sm:$0x1] -inf
        %404 = vst [vmem:[#allocation4 + $0x1] sm:$0x1] -inf
        %405 = vst [vmem:[#allocation5] sm:$0x1] 0.0
        %406 = vst [vmem:[#allocation5 + $0x1] sm:$0x1] 0.0
        %vm407 = vcmask 0
        %408 = vst.msk [vmem:[#allocation6] sm:$0x1] %vm407, 0.0
      $region52: #{negative_weighted_clip_loss.1} parent=43 // pred_fallthru
        _
      %v409 = vld [vmem:[%s330] sm:$0xff]
      %v410 = vld [vmem:[%s330 + $0x8] sm:$0xff]
      %v411 = vld [vmem:[%s330 + $0x10] sm:$0xff]
      %v412 = vld [vmem:[%s330 + $0x18] sm:$0xff]
      %v413 = vld [vmem:[%s330 + $0x20] sm:$0xff]
      %v414 = vld [vmem:[%s330 + $0x28] sm:$0xff]
      %v415 = vld [vmem:[%s330 + $0x30] sm:$0xff]
      %v416 = vld [vmem:[%s330 + $0x38] sm:$0xff]
      %v417 = vld [vmem:[%s330 + $0x40] sm:$0xff]
      %v418 = vld [vmem:[%s330 + $0x48] sm:$0xff]
      %v419 = vld [vmem:[%s330 + $0x50] sm:$0xff]
      %v420 = vld [vmem:[%s330 + $0x58] sm:$0xff]
      %v421 = vld [vmem:[%s330 + $0x60] sm:$0xff]
      %v422 = vld [vmem:[%s330 + $0x68] sm:$0xff]
      %v423 = vld [vmem:[%s330 + $0x70] sm:$0xff]
      %v424 = vld [vmem:[%s330 + $0x78] sm:$0xff]
      %v425 = vld [vmem:[%s336] sm:$0xff]
      %v426 = vld [vmem:[%s336 + $0x8] sm:$0xff]
      %v427 = vld [vmem:[%s336 + $0x10] sm:$0xff]
      %v428 = vld [vmem:[%s336 + $0x18] sm:$0xff]
      %v429 = vld [vmem:[%s336 + $0x20] sm:$0xff]
      %v430 = vld [vmem:[%s336 + $0x28] sm:$0xff]
      %v431 = vld [vmem:[%s336 + $0x30] sm:$0xff]
      %v432 = vld [vmem:[%s336 + $0x38] sm:$0xff]
      %v433 = vld [vmem:[%s336 + $0x40] sm:$0xff]
      %v434 = vld [vmem:[%s336 + $0x48] sm:$0xff]
      %v435 = vld [vmem:[%s336 + $0x50] sm:$0xff]
      %v436 = vld [vmem:[%s336 + $0x58] sm:$0xff]
      %v437 = vld [vmem:[%s336 + $0x60] sm:$0xff]
      %v438 = vld [vmem:[%s336 + $0x68] sm:$0xff]
      %v439 = vld [vmem:[%s336 + $0x70] sm:$0xff]
      %v440 = vld [vmem:[%s336 + $0x78] sm:$0xff]
      %441 = vmatpush.xpose.msra.mxu0 %v440
      %442 = vmatpush.xpose.msra.mxu0 %v439
      %443 = vmatpush.xpose.msra.mxu0 %v438
      %444 = vmatpush.xpose.msra.mxu0 %v437
      %445 = vmatpush.xpose.msra.mxu0 %v436
      %446 = vmatpush.xpose.msra.mxu0 %v435
      %447 = vmatpush.xpose.msra.mxu0 %v434
      %448 = vmatpush.xpose.msra.mxu0 %v433
      %449 = vmatpush.xpose.msra.mxu0 %v432
      %450 = vmatpush.xpose.msra.mxu0 %v431
      %451 = vmatpush.xpose.msra.mxu0 %v430
      %452 = vmatpush.xpose.msra.mxu0 %v429
      %453 = vmatpush.xpose.msra.mxu0 %v428
      %454 = vmatpush.xpose.msra.mxu0 %v427
      %455 = vmatpush.xpose.msra.mxu0 %v426
      %456 = vmatpush.xpose.msra.mxu0 %v425
      %457 = vmatmul.f32.gmra.mxu0 %v409
      %v458 = vpop.f32.mrf.mxu0
      %v459 = vadd.f32 0.0, %v458
      %460 = vmatmul.f32.gmra.mxu0 %v410
      %v461 = vpop.f32.mrf.mxu0
      %v462 = vadd.f32 0.0, %v461
      %463 = vmatmul.f32.gmra.mxu0 %v411
      %v464 = vpop.f32.mrf.mxu0
      %v465 = vadd.f32 0.0, %v464
      %466 = vmatmul.f32.gmra.mxu0 %v412
      %v467 = vpop.f32.mrf.mxu0
      %v468 = vadd.f32 0.0, %v467
      %469 = vmatmul.f32.gmra.mxu0 %v413
      %v470 = vpop.f32.mrf.mxu0
      %v471 = vadd.f32 0.0, %v470
      %472 = vmatmul.f32.gmra.mxu0 %v414
      %v473 = vpop.f32.mrf.mxu0
      %v474 = vadd.f32 0.0, %v473
      %475 = vmatmul.f32.gmra.mxu0 %v415
      %v476 = vpop.f32.mrf.mxu0
      %v477 = vadd.f32 0.0, %v476
      %478 = vmatmul.f32.gmra.mxu0 %v416
      %v479 = vpop.f32.mrf.mxu0
      %v480 = vadd.f32 0.0, %v479
      %481 = vmatmul.f32.gmra.mxu0 %v417
      %v482 = vpop.f32.mrf.mxu0
      %v483 = vadd.f32 0.0, %v482
      %484 = vmatmul.f32.gmra.mxu0 %v418
      %v485 = vpop.f32.mrf.mxu0
      %v486 = vadd.f32 0.0, %v485
      %487 = vmatmul.f32.gmra.mxu0 %v419
      %v488 = vpop.f32.mrf.mxu0
      %v489 = vadd.f32 0.0, %v488
      %490 = vmatmul.f32.gmra.mxu0 %v420
      %v491 = vpop.f32.mrf.mxu0
      %v492 = vadd.f32 0.0, %v491
      %493 = vmatmul.f32.gmra.mxu0 %v421
      %v494 = vpop.f32.mrf.mxu0
      %v495 = vadd.f32 0.0, %v494
      %496 = vmatmul.f32.gmra.mxu0 %v422
      %v497 = vpop.f32.mrf.mxu0
      %v498 = vadd.f32 0.0, %v497
      %499 = vmatmul.f32.gmra.mxu0 %v423
      %v500 = vpop.f32.mrf.mxu0
      %v501 = vadd.f32 0.0, %v500
      %502 = vmatmul.f32.gmra.mxu0 %v424
      %v503 = vpop.f32.mrf.mxu0
      %v504 = vadd.f32 0.0, %v503
      %505 = vdwg.mxu0
      %v506 = vld [vmem:[%s342] sm:$0xff]
      %v507 = vld [vmem:[%s342 + $0x8] sm:$0xff]
      %v508 = vld [vmem:[%s342 + $0x10] sm:$0xff]
      %v509 = vld [vmem:[%s342 + $0x18] sm:$0xff]
      %v510 = vld [vmem:[%s342 + $0x20] sm:$0xff]
      %v511 = vld [vmem:[%s342 + $0x28] sm:$0xff]
      %v512 = vld [vmem:[%s342 + $0x30] sm:$0xff]
      %v513 = vld [vmem:[%s342 + $0x38] sm:$0xff]
      %v514 = vld [vmem:[%s342 + $0x40] sm:$0xff]
      %v515 = vld [vmem:[%s342 + $0x48] sm:$0xff]
      %v516 = vld [vmem:[%s342 + $0x50] sm:$0xff]
      %v517 = vld [vmem:[%s342 + $0x58] sm:$0xff]
      %v518 = vld [vmem:[%s342 + $0x60] sm:$0xff]
      %v519 = vld [vmem:[%s342 + $0x68] sm:$0xff]
      %v520 = vld [vmem:[%s342 + $0x70] sm:$0xff]
      %v521 = vld [vmem:[%s342 + $0x78] sm:$0xff]
      %v522 = vld [vmem:[#allocation2] sm:$0xff]
      %v523 = vld [vmem:[#allocation2 + $0x8] sm:$0xff]
      %v524 = vld [vmem:[#allocation2 + $0x10] sm:$0xff]
      %v525 = vld [vmem:[#allocation2 + $0x18] sm:$0xff]
      %v526 = vld [vmem:[#allocation2 + $0x20] sm:$0xff]
      %v527 = vld [vmem:[#allocation2 + $0x28] sm:$0xff]
      %v528 = vld [vmem:[#allocation2 + $0x30] sm:$0xff]
      %v529 = vld [vmem:[#allocation2 + $0x38] sm:$0xff]
      %v530 = vld [vmem:[#allocation2 + $0x40] sm:$0xff]
      %v531 = vld [vmem:[#allocation2 + $0x48] sm:$0xff]
      %v532 = vld [vmem:[#allocation2 + $0x50] sm:$0xff]
      %v533 = vld [vmem:[#allocation2 + $0x58] sm:$0xff]
      %v534 = vld [vmem:[#allocation2 + $0x60] sm:$0xff]
      %v535 = vld [vmem:[#allocation2 + $0x68] sm:$0xff]
      %v536 = vld [vmem:[#allocation2 + $0x70] sm:$0xff]
      %v537 = vld [vmem:[#allocation2 + $0x78] sm:$0xff]
      %538 = vmax.xlane.f32.xlu0 %v459
      %v539 = vpop.xlane.xlu0 %538
      %540 = vmax.xlane.f32.xlu0 %v462
      %v541 = vpop.xlane.xlu0 %540
      %542 = vmax.xlane.f32.xlu0 %v465
      %v543 = vpop.xlane.xlu0 %542
      %544 = vmax.xlane.f32.xlu0 %v468
      %v545 = vpop.xlane.xlu0 %544
      %546 = vmax.xlane.f32.xlu0 %v471
      %v547 = vpop.xlane.xlu0 %546
      %548 = vmax.xlane.f32.xlu0 %v474
      %v549 = vpop.xlane.xlu0 %548
      %550 = vmax.xlane.f32.xlu0 %v477
      %v551 = vpop.xlane.xlu0 %550
      %552 = vmax.xlane.f32.xlu0 %v480
      %v553 = vpop.xlane.xlu0 %552
      %554 = vmax.xlane.f32.xlu0 %v483
      %v555 = vpop.xlane.xlu0 %554
      %556 = vmax.xlane.f32.xlu0 %v486
      %v557 = vpop.xlane.xlu0 %556
      %558 = vmax.xlane.f32.xlu0 %v489
      %v559 = vpop.xlane.xlu0 %558
      %560 = vmax.xlane.f32.xlu0 %v492
      %v561 = vpop.xlane.xlu0 %560
      %562 = vmax.xlane.f32.xlu0 %v495
      %v563 = vpop.xlane.xlu0 %562
      %564 = vmax.xlane.f32.xlu0 %v498
      %v565 = vpop.xlane.xlu0 %564
      %566 = vmax.xlane.f32.xlu0 %v501
      %v567 = vpop.xlane.xlu0 %566
      %568 = vmax.xlane.f32.xlu0 %v504
      %v569 = vpop.xlane.xlu0 %568
      %v570 = vmax.f32 %v522, %v539
      %v571 = vmax.f32 %v523, %v541
      %v572 = vmax.f32 %v524, %v543
      %v573 = vmax.f32 %v525, %v545
      %v574 = vmax.f32 %v526, %v547
      %v575 = vmax.f32 %v527, %v549
      %v576 = vmax.f32 %v528, %v551
      %v577 = vmax.f32 %v529, %v553
      %v578 = vmax.f32 %v530, %v555
      %v579 = vmax.f32 %v531, %v557
      %v580 = vmax.f32 %v532, %v559
      %v581 = vmax.f32 %v533, %v561
      %v582 = vmax.f32 %v534, %v563
      %v583 = vmax.f32 %v535, %v565
      %v584 = vmax.f32 %v536, %v567
      %v585 = vmax.f32 %v537, %v569
      %587 = vset.pattern.permute.xlu0 0
      %588 = vperm.xlu0 %587, %v570
      %v589 = vpop.permute.xlu0 %588
      %592 = vset.pattern.permute.xlu0 0
      %593 = vperm.xlu0 %592, %v571
      %v594 = vpop.permute.xlu0 %593
      %597 = vset.pattern.permute.xlu0 0
      %598 = vperm.xlu0 %597, %v572
      %v599 = vpop.permute.xlu0 %598
      %602 = vset.pattern.permute.xlu0 0
      %603 = vperm.xlu0 %602, %v573
      %v604 = vpop.permute.xlu0 %603
      %607 = vset.pattern.permute.xlu0 0
      %608 = vperm.xlu0 %607, %v574
      %v609 = vpop.permute.xlu0 %608
      %612 = vset.pattern.permute.xlu0 0
      %613 = vperm.xlu0 %612, %v575
      %v614 = vpop.permute.xlu0 %613
      %617 = vset.pattern.permute.xlu0 0
      %618 = vperm.xlu0 %617, %v576
      %v619 = vpop.permute.xlu0 %618
      %622 = vset.pattern.permute.xlu0 0
      %623 = vperm.xlu0 %622, %v577
      %v624 = vpop.permute.xlu0 %623
      %627 = vset.pattern.permute.xlu0 0
      %628 = vperm.xlu0 %627, %v578
      %v629 = vpop.permute.xlu0 %628
      %632 = vset.pattern.permute.xlu0 0
      %633 = vperm.xlu0 %632, %v579
      %v634 = vpop.permute.xlu0 %633
      %637 = vset.pattern.permute.xlu0 0
      %638 = vperm.xlu0 %637, %v580
      %v639 = vpop.permute.xlu0 %638
      %642 = vset.pattern.permute.xlu0 0
      %643 = vperm.xlu0 %642, %v581
      %v644 = vpop.permute.xlu0 %643
      %647 = vset.pattern.permute.xlu0 0
      %648 = vperm.xlu0 %647, %v582
      %v649 = vpop.permute.xlu0 %648
      %652 = vset.pattern.permute.xlu0 0
      %653 = vperm.xlu0 %652, %v583
      %v654 = vpop.permute.xlu0 %653
      %657 = vset.pattern.permute.xlu0 0
      %658 = vperm.xlu0 %657, %v584
      %v659 = vpop.permute.xlu0 %658
      %662 = vset.pattern.permute.xlu0 0
      %663 = vperm.xlu0 %662, %v585
      %v664 = vpop.permute.xlu0 %663
      %v666 = vsub.f32 %v459, %v589
      %v667 = vsub.f32 %v462, %v594
      %v668 = vsub.f32 %v465, %v599
      %v669 = vsub.f32 %v468, %v604
      %v670 = vsub.f32 %v471, %v609
      %v671 = vsub.f32 %v474, %v614
      %v672 = vsub.f32 %v477, %v619
      %v673 = vsub.f32 %v480, %v624
      %v674 = vsub.f32 %v483, %v629
      %v675 = vsub.f32 %v486, %v634
      %v676 = vsub.f32 %v489, %v639
      %v677 = vsub.f32 %v492, %v644
      %v678 = vsub.f32 %v495, %v649
      %v679 = vsub.f32 %v498, %v654
      %v680 = vsub.f32 %v501, %v659
      %v681 = vsub.f32 %v504, %v664
      %v682 = vmul.f32 %v666, 1.442695
      %v683 = vpow.pop %v682
      %v684 = vmul.f32 %v667, 1.442695
      %v685 = vpow.pop %v684
      %v686 = vmul.f32 %v668, 1.442695
      %v687 = vpow.pop %v686
      %v688 = vmul.f32 %v669, 1.442695
      %v689 = vpow.pop %v688
      %v690 = vmul.f32 %v670, 1.442695
      %v691 = vpow.pop %v690
      %v692 = vmul.f32 %v671, 1.442695
      %v693 = vpow.pop %v692
      %v694 = vmul.f32 %v672, 1.442695
      %v695 = vpow.pop %v694
      %v696 = vmul.f32 %v673, 1.442695
      %v697 = vpow.pop %v696
      %v698 = vmul.f32 %v674, 1.442695
      %v699 = vpow.pop %v698
      %v700 = vmul.f32 %v675, 1.442695
      %v701 = vpow.pop %v700
      %v702 = vmul.f32 %v676, 1.442695
      %v703 = vpow.pop %v702
      %v704 = vmul.f32 %v677, 1.442695
      %v705 = vpow.pop %v704
      %v706 = vmul.f32 %v678, 1.442695
      %v707 = vpow.pop %v706
      %v708 = vmul.f32 %v679, 1.442695
      %v709 = vpow.pop %v708
      %v710 = vmul.f32 %v680, 1.442695
      %v711 = vpow.pop %v710
      %v712 = vmul.f32 %v681, 1.442695
      %v713 = vpow.pop %v712
      %714 = vmatpush.msra.mxu0 %v521
      %715 = vmatpush.msra.mxu0 %v520
      %716 = vmatpush.msra.mxu0 %v519
      %717 = vmatpush.msra.mxu0 %v518
      %718 = vmatpush.msra.mxu0 %v517
      %719 = vmatpush.msra.mxu0 %v516
      %720 = vmatpush.msra.mxu0 %v515
      %721 = vmatpush.msra.mxu0 %v514
      %722 = vmatpush.msra.mxu0 %v513
      %723 = vmatpush.msra.mxu0 %v512
      %724 = vmatpush.msra.mxu0 %v511
      %725 = vmatpush.msra.mxu0 %v510
      %726 = vmatpush.msra.mxu0 %v509
      %727 = vmatpush.msra.mxu0 %v508
      %728 = vmatpush.msra.mxu0 %v507
      %729 = vmatpush.msra.mxu0 %v506
      %730 = vmatmul.f32.gmra.mxu0 %v683
      %v731 = vpop.f32.mrf.mxu0
      %v732 = vadd.f32 0.0, %v731
      %733 = vmatmul.f32.gmra.mxu0 %v685
      %v734 = vpop.f32.mrf.mxu0
      %v735 = vadd.f32 0.0, %v734
      %736 = vmatmul.f32.gmra.mxu0 %v687
      %v737 = vpop.f32.mrf.mxu0
      %v738 = vadd.f32 0.0, %v737
      %739 = vmatmul.f32.gmra.mxu0 %v689
      %v740 = vpop.f32.mrf.mxu0
      %v741 = vadd.f32 0.0, %v740
      %742 = vmatmul.f32.gmra.mxu0 %v691
      %v743 = vpop.f32.mrf.mxu0
      %v744 = vadd.f32 0.0, %v743
      %745 = vmatmul.f32.gmra.mxu0 %v693
      %v746 = vpop.f32.mrf.mxu0
      %v747 = vadd.f32 0.0, %v746
      %748 = vmatmul.f32.gmra.mxu0 %v695
      %v749 = vpop.f32.mrf.mxu0
      %v750 = vadd.f32 0.0, %v749
      %751 = vmatmul.f32.gmra.mxu0 %v697
      %v752 = vpop.f32.mrf.mxu0
      %v753 = vadd.f32 0.0, %v752
      %754 = vmatmul.f32.gmra.mxu0 %v699
      %v755 = vpop.f32.mrf.mxu0
      %v756 = vadd.f32 0.0, %v755
      %757 = vmatmul.f32.gmra.mxu0 %v701
      %v758 = vpop.f32.mrf.mxu0
      %v759 = vadd.f32 0.0, %v758
      %760 = vmatmul.f32.gmra.mxu0 %v703
      %v761 = vpop.f32.mrf.mxu0
      %v762 = vadd.f32 0.0, %v761
      %763 = vmatmul.f32.gmra.mxu0 %v705
      %v764 = vpop.f32.mrf.mxu0
      %v765 = vadd.f32 0.0, %v764
      %766 = vmatmul.f32.gmra.mxu0 %v707
      %v767 = vpop.f32.mrf.mxu0
      %v768 = vadd.f32 0.0, %v767
      %769 = vmatmul.f32.gmra.mxu0 %v709
      %v770 = vpop.f32.mrf.mxu0
      %v771 = vadd.f32 0.0, %v770
      %772 = vmatmul.f32.gmra.mxu0 %v711
      %v773 = vpop.f32.mrf.mxu0
      %v774 = vadd.f32 0.0, %v773
      %775 = vmatmul.f32.gmra.mxu0 %v713
      %v776 = vpop.f32.mrf.mxu0
      %v777 = vadd.f32 0.0, %v776
      %778 = vdwg.mxu0
      %v779 = vld [vmem:[#allocation3] sm:$0xff]
      %v780 = vld [vmem:[#allocation3 + $0x8] sm:$0xff]
      %v781 = vld [vmem:[#allocation3 + $0x10] sm:$0xff]
      %v782 = vld [vmem:[#allocation3 + $0x18] sm:$0xff]
      %v783 = vld [vmem:[#allocation3 + $0x20] sm:$0xff]
      %v784 = vld [vmem:[#allocation3 + $0x28] sm:$0xff]
      %v785 = vld [vmem:[#allocation3 + $0x30] sm:$0xff]
      %v786 = vld [vmem:[#allocation3 + $0x38] sm:$0xff]
      %v787 = vld [vmem:[#allocation3 + $0x40] sm:$0xff]
      %v788 = vld [vmem:[#allocation3 + $0x48] sm:$0xff]
      %v789 = vld [vmem:[#allocation3 + $0x50] sm:$0xff]
      %v790 = vld [vmem:[#allocation3 + $0x58] sm:$0xff]
      %v791 = vld [vmem:[#allocation3 + $0x60] sm:$0xff]
      %v792 = vld [vmem:[#allocation3 + $0x68] sm:$0xff]
      %v793 = vld [vmem:[#allocation3 + $0x70] sm:$0xff]
      %v794 = vld [vmem:[#allocation3 + $0x78] sm:$0xff]
      %v795 = vsub.f32 %v522, %v570
      %v796 = vsub.f32 %v523, %v571
      %v797 = vsub.f32 %v524, %v572
      %v798 = vsub.f32 %v525, %v573
      %v799 = vsub.f32 %v526, %v574
      %v800 = vsub.f32 %v527, %v575
      %v801 = vsub.f32 %v528, %v576
      %v802 = vsub.f32 %v529, %v577
      %v803 = vsub.f32 %v530, %v578
      %v804 = vsub.f32 %v531, %v579
      %v805 = vsub.f32 %v532, %v580
      %v806 = vsub.f32 %v533, %v581
      %v807 = vsub.f32 %v534, %v582
      %v808 = vsub.f32 %v535, %v583
      %v809 = vsub.f32 %v536, %v584
      %v810 = vsub.f32 %v537, %v585
      %v811 = vmul.f32 %v795, 1.442695
      %v812 = vpow.pop %v811
      %v813 = vmul.f32 %v796, 1.442695
      %v814 = vpow.pop %v813
      %v815 = vmul.f32 %v797, 1.442695
      %v816 = vpow.pop %v815
      %v817 = vmul.f32 %v798, 1.442695
      %v818 = vpow.pop %v817
      %v819 = vmul.f32 %v799, 1.442695
      %v820 = vpow.pop %v819
      %v821 = vmul.f32 %v800, 1.442695
      %v822 = vpow.pop %v821
      %v823 = vmul.f32 %v801, 1.442695
      %v824 = vpow.pop %v823
      %v825 = vmul.f32 %v802, 1.442695
      %v826 = vpow.pop %v825
      %v827 = vmul.f32 %v803, 1.442695
      %v828 = vpow.pop %v827
      %v829 = vmul.f32 %v804, 1.442695
      %v830 = vpow.pop %v829
      %v831 = vmul.f32 %v805, 1.442695
      %v832 = vpow.pop %v831
      %v833 = vmul.f32 %v806, 1.442695
      %v834 = vpow.pop %v833
      %v835 = vmul.f32 %v807, 1.442695
      %v836 = vpow.pop %v835
      %v837 = vmul.f32 %v808, 1.442695
      %v838 = vpow.pop %v837
      %v839 = vmul.f32 %v809, 1.442695
      %v840 = vpow.pop %v839
      %v841 = vmul.f32 %v810, 1.442695
      %v842 = vpow.pop %v841
      %v843 = vmul.f32 %v779, %v812
      %v844 = vmul.f32 %v780, %v814
      %v845 = vmul.f32 %v781, %v816
      %v846 = vmul.f32 %v782, %v818
      %v847 = vmul.f32 %v783, %v820
      %v848 = vmul.f32 %v784, %v822
      %v849 = vmul.f32 %v785, %v824
      %v850 = vmul.f32 %v786, %v826
      %v851 = vmul.f32 %v787, %v828
      %v852 = vmul.f32 %v788, %v830
      %v853 = vmul.f32 %v789, %v832
      %v854 = vmul.f32 %v790, %v834
      %v855 = vmul.f32 %v791, %v836
      %v856 = vmul.f32 %v792, %v838
      %v857 = vmul.f32 %v793, %v840
      %v858 = vmul.f32 %v794, %v842
      %v859 = vadd.f32 %v843, %v732
      %v860 = vadd.f32 %v844, %v735
      %v861 = vadd.f32 %v845, %v738
      %v862 = vadd.f32 %v846, %v741
      %v863 = vadd.f32 %v847, %v744
      %v864 = vadd.f32 %v848, %v747
      %v865 = vadd.f32 %v849, %v750
      %v866 = vadd.f32 %v850, %v753
      %v867 = vadd.f32 %v851, %v756
      %v868 = vadd.f32 %v852, %v759
      %v869 = vadd.f32 %v853, %v762
      %v870 = vadd.f32 %v854, %v765
      %v871 = vadd.f32 %v855, %v768
      %v872 = vadd.f32 %v856, %v771
      %v873 = vadd.f32 %v857, %v774
      %v874 = vadd.f32 %v858, %v777
      %vm875 = vcmask 7168
      %876 = vst.msk [vmem:[#allocation3] sm:$0xff] %vm875, %v859
      %877 = vst.msk [vmem:[#allocation3 + $0x8] sm:$0xff] %vm875, %v860
      %878 = vst.msk [vmem:[#allocation3 + $0x10] sm:$0xff] %vm875, %v861
      %879 = vst.msk [vmem:[#allocation3 + $0x18] sm:$0xff] %vm875, %v862
      %880 = vst.msk [vmem:[#allocation3 + $0x20] sm:$0xff] %vm875, %v863
      %881 = vst.msk [vmem:[#allocation3 + $0x28] sm:$0xff] %vm875, %v864
      %882 = vst.msk [vmem:[#allocation3 + $0x30] sm:$0xff] %vm875, %v865
      %883 = vst.msk [vmem:[#allocation3 + $0x38] sm:$0xff] %vm875, %v866
      %884 = vst.msk [vmem:[#allocation3 + $0x40] sm:$0xff] %vm875, %v867
      %885 = vst.msk [vmem:[#allocation3 + $0x48] sm:$0xff] %vm875, %v868
      %886 = vst.msk [vmem:[#allocation3 + $0x50] sm:$0xff] %vm875, %v869
      %887 = vst.msk [vmem:[#allocation3 + $0x58] sm:$0xff] %vm875, %v870
      %888 = vst.msk [vmem:[#allocation3 + $0x60] sm:$0xff] %vm875, %v871
      %889 = vst.msk [vmem:[#allocation3 + $0x68] sm:$0xff] %vm875, %v872
      %890 = vst.msk [vmem:[#allocation3 + $0x70] sm:$0xff] %vm875, %v873
      %891 = vst.msk [vmem:[#allocation3 + $0x78] sm:$0xff] %vm875, %v874
      %892 = vst.msk [vmem:[#allocation2] sm:$0xff] %vm875, %v570
      %893 = vst.msk [vmem:[#allocation2 + $0x8] sm:$0xff] %vm875, %v571
      %894 = vst.msk [vmem:[#allocation2 + $0x10] sm:$0xff] %vm875, %v572
      %895 = vst.msk [vmem:[#allocation2 + $0x18] sm:$0xff] %vm875, %v573
      %896 = vst.msk [vmem:[#allocation2 + $0x20] sm:$0xff] %vm875, %v574
      %897 = vst.msk [vmem:[#allocation2 + $0x28] sm:$0xff] %vm875, %v575
      %898 = vst.msk [vmem:[#allocation2 + $0x30] sm:$0xff] %vm875, %v576
      %899 = vst.msk [vmem:[#allocation2 + $0x38] sm:$0xff] %vm875, %v577
      %900 = vst.msk [vmem:[#allocation2 + $0x40] sm:$0xff] %vm875, %v578
      %901 = vst.msk [vmem:[#allocation2 + $0x48] sm:$0xff] %vm875, %v579
      %902 = vst.msk [vmem:[#allocation2 + $0x50] sm:$0xff] %vm875, %v580
      %903 = vst.msk [vmem:[#allocation2 + $0x58] sm:$0xff] %vm875, %v581
      %904 = vst.msk [vmem:[#allocation2 + $0x60] sm:$0xff] %vm875, %v582
      %905 = vst.msk [vmem:[#allocation2 + $0x68] sm:$0xff] %vm875, %v583
      %906 = vst.msk [vmem:[#allocation2 + $0x70] sm:$0xff] %vm875, %v584
      %907 = vst.msk [vmem:[#allocation2 + $0x78] sm:$0xff] %vm875, %v585
      %v908 = vld [vmem:[%s346] sm:$0x1]
      %s909 = scalar_lea.vmem [#allocation4], %s22
      %v910 = vld [vmem:[%s909] sm:$0x1]
      %v911 = vmax.f32 %v459, %v471
      %v912 = vmax.f32 %v462, %v474
      %v913 = vmax.f32 %v465, %v477
      %v914 = vmax.f32 %v468, %v480
      %v915 = vmax.f32 %v911, %v483
      %v916 = vmax.f32 %v912, %v486
      %v917 = vmax.f32 %v913, %v489
      %v918 = vmax.f32 %v914, %v492
      %v919 = vmax.f32 %v915, %v495
      %v920 = vmax.f32 %v916, %v498
      %v921 = vmax.f32 %v917, %v501
      %v922 = vmax.f32 %v918, %v504
      %v923 = vmax.f32 %v919, %v920
      %v924 = vmax.f32 %v921, %v922
      %v925 = vmax.f32 %v923, %v924
      %v926 = vrot.slane %v925, 4
      %v927 = vmax.f32 %v925, %v926
      %v928 = vrot.slane %v927, 2
      %v929 = vmax.f32 %v927, %v928
      %v930 = vrot.slane %v929, 1
      %v931 = vmax.f32 %v929, %v930
      %v932 = vmax.f32 %v910, %v931
      %v934 = vperm.slane %v932, 0
      %v936 = vsub.f32 %v459, %v934
      %v937 = vsub.f32 %v462, %v934
      %v938 = vsub.f32 %v465, %v934
      %v939 = vsub.f32 %v468, %v934
      %v940 = vsub.f32 %v471, %v934
      %v941 = vsub.f32 %v474, %v934
      %v942 = vsub.f32 %v477, %v934
      %v943 = vsub.f32 %v480, %v934
      %v944 = vsub.f32 %v483, %v934
      %v945 = vsub.f32 %v486, %v934
      %v946 = vsub.f32 %v489, %v934
      %v947 = vsub.f32 %v492, %v934
      %v948 = vsub.f32 %v495, %v934
      %v949 = vsub.f32 %v498, %v934
      %v950 = vsub.f32 %v501, %v934
      %v951 = vsub.f32 %v504, %v934
      %v952 = vmul.f32 %v936, 1.442695
      %v953 = vpow.pop %v952
      %v954 = vmul.f32 %v937, 1.442695
      %v955 = vpow.pop %v954
      %v956 = vmul.f32 %v938, 1.442695
      %v957 = vpow.pop %v956
      %v958 = vmul.f32 %v939, 1.442695
      %v959 = vpow.pop %v958
      %v960 = vmul.f32 %v940, 1.442695
      %v961 = vpow.pop %v960
      %v962 = vmul.f32 %v941, 1.442695
      %v963 = vpow.pop %v962
      %v964 = vmul.f32 %v942, 1.442695
      %v965 = vpow.pop %v964
      %v966 = vmul.f32 %v943, 1.442695
      %v967 = vpow.pop %v966
      %v968 = vmul.f32 %v944, 1.442695
      %v969 = vpow.pop %v968
      %v970 = vmul.f32 %v945, 1.442695
      %v971 = vpow.pop %v970
      %v972 = vmul.f32 %v946, 1.442695
      %v973 = vpow.pop %v972
      %v974 = vmul.f32 %v947, 1.442695
      %v975 = vpow.pop %v974
      %v976 = vmul.f32 %v948, 1.442695
      %v977 = vpow.pop %v976
      %v978 = vmul.f32 %v949, 1.442695
      %v979 = vpow.pop %v978
      %v980 = vmul.f32 %v950, 1.442695
      %v981 = vpow.pop %v980
      %v982 = vmul.f32 %v951, 1.442695
      %v983 = vpow.pop %v982
      %984 = vmatpush.msra.mxu0 %v983
      %985 = vmatpush.msra.mxu0 %v981
      %986 = vmatpush.msra.mxu0 %v979
      %987 = vmatpush.msra.mxu0 %v977
      %988 = vmatpush.msra.mxu0 %v975
      %989 = vmatpush.msra.mxu0 %v973
      %990 = vmatpush.msra.mxu0 %v971
      %991 = vmatpush.msra.mxu0 %v969
      %992 = vmatpush.msra.mxu0 %v967
      %993 = vmatpush.msra.mxu0 %v965
      %994 = vmatpush.msra.mxu0 %v963
      %995 = vmatpush.msra.mxu0 %v961
      %996 = vmatpush.msra.mxu0 %v959
      %997 = vmatpush.msra.mxu0 %v957
      %998 = vmatpush.msra.mxu0 %v955
      %999 = vmatpush.msra.mxu0 %v953
      %1000 = vmatmul.f32.gmra.mxu0 %v908
      %v1001 = vpop.f32.mrf.mxu0
      %v1002 = vadd.f32 0.0, %v1001
      %1003 = vdwg.mxu0
      %s1004 = scalar_lea.vmem [#allocation5], %s22
      %v1005 = vld [vmem:[%s1004] sm:$0x1]
      %v1006 = vsub.f32 %v910, %v932
      %v1007 = vmul.f32 %v1006, 1.442695
      %v1008 = vpow.pop %v1007
      %v1009 = vmul.f32 %v1005, %v1008
      %v1010 = vadd.f32 %v1009, %v1002
      %1011 = vst [vmem:[%s1004] sm:$0x1] %v1010
      %1012 = vst [vmem:[%s909] sm:$0x1] %v932
      %p1013 = scmp.eq.s32.totalorder %s21, 1
      // Predicated region
      $region53: #{negative_weighted_clip_loss.1} parent=43 // pred_check
        %p1014 = pneg %p1013
      $region54: #{negative_weighted_clip_loss.1} parent=43 // pred_check_branch
        %1016 = sbr.rel (%p1014) target = $region56
      $region55: #{negative_weighted_clip_loss.1} parent=43 // pred_region
        %v1017 = vld [vmem:[%s356] sm:$0x7]
        %v1018 = vld [vmem:[%s909] sm:$0x1]
        %v1019 = vld [vmem:[%s1004] sm:$0x1]
        %v1020 = vmax.f32 %v1019, 1e-30
        %v1021 = vlog2.pop %v1020
        %v1022 = vmul.f32 %v1021, 0.6931472
        %v1023 = vadd.f32 %v1018, %v1022
        %v1025 = vperm.slane %v1023, 0
        %v1027 = vsub.f32 %v1017, %v1025
        %v1029 = vrot.slane %v1027, 2
        %v1031 = vmul.f32 %v1017, %v1029
        %v1033 = vrot.slane %v1031, 7
        %v1035 = vadd.f32 %v1017, %v1033
        %v1037 = vrot.slane %v1035, 1
        %vm1039 = vcmask 1040384
        %v1040 = vsel %vm1039, %v1037, 0.0
        %1041 = vadd.xlane.f32.xlu0 %v1040
        %v1042 = vpop.xlane.xlu0 %1041
        %v1043 = vrot.slane %v1042, 4
        %v1044 = vadd.f32 %v1042, %v1043
        %v1045 = vrot.slane %v1044, 2
        %v1046 = vadd.f32 %v1044, %v1045
        %v1047 = vrot.slane %v1046, 1
        %v1048 = vadd.f32 %v1046, %v1047
        %s1049 = vtos %v1048
        %v1050 = vstv %s1049
        %v1051 = vsub.f32 0.0, %v1050
        %v1052 = vld [vmem:[#allocation6] sm:$0x1]
        %s1053 = scalar_select %p361, 1, 0
        %v1054 = vstv %s1053
        %vm1055 = vcmp.eq.s32.totalorder %v1054, 1
        %v1056 = vsel %vm1055, 0.0, %v1052
        %v1057 = vadd.f32 %v1056, %v1051
        %vm1058 = vcmask 0
        %1059 = vst.msk [vmem:[#allocation6] sm:$0x1] %vm1058, %v1057
      $region56: #{negative_weighted_clip_loss.1} parent=43 // pred_fallthru
        _
      %p1060 = scmp.eq.s32.totalorder %s22, 1
      // Predicated region
      $region57: #{negative_weighted_clip_loss.1} parent=43 // pred_check
        %p1061 = pneg %p1060
      $region58: #{negative_weighted_clip_loss.1} parent=43 // pred_check_branch
        %1063 = sbr.rel (%p1061) target = $region60
      $region59: #{negative_weighted_clip_loss.1} parent=43 // pred_region
        %v1064 = vld [vmem:[%s351] sm:$0xff]
        %v1065 = vld [vmem:[%s351 + $0x8] sm:$0xff]
        %v1066 = vld [vmem:[%s351 + $0x10] sm:$0xff]
        %v1067 = vld [vmem:[%s351 + $0x18] sm:$0xff]
        %v1068 = vld [vmem:[%s351 + $0x20] sm:$0xff]
        %v1069 = vld [vmem:[%s351 + $0x28] sm:$0xff]
        %v1070 = vld [vmem:[%s351 + $0x30] sm:$0xff]
        %v1071 = vld [vmem:[%s351 + $0x38] sm:$0xff]
        %v1072 = vld [vmem:[%s351 + $0x40] sm:$0xff]
        %v1073 = vld [vmem:[%s351 + $0x48] sm:$0xff]
        %v1074 = vld [vmem:[%s351 + $0x50] sm:$0xff]
        %v1075 = vld [vmem:[%s351 + $0x58] sm:$0xff]
        %v1076 = vld [vmem:[%s351 + $0x60] sm:$0xff]
        %v1077 = vld [vmem:[%s351 + $0x68] sm:$0xff]
        %v1078 = vld [vmem:[%s351 + $0x70] sm:$0xff]
        %v1079 = vld [vmem:[%s351 + $0x78] sm:$0xff]
        %v1080 = vld [vmem:[#allocation2] sm:$0xff]
        %v1081 = vld [vmem:[#allocation2 + $0x8] sm:$0xff]
        %v1082 = vld [vmem:[#allocation2 + $0x10] sm:$0xff]
        %v1083 = vld [vmem:[#allocation2 + $0x18] sm:$0xff]
        %v1084 = vld [vmem:[#allocation2 + $0x20] sm:$0xff]
        %v1085 = vld [vmem:[#allocation2 + $0x28] sm:$0xff]
        %v1086 = vld [vmem:[#allocation2 + $0x30] sm:$0xff]
        %v1087 = vld [vmem:[#allocation2 + $0x38] sm:$0xff]
        %v1088 = vld [vmem:[#allocation2 + $0x40] sm:$0xff]
        %v1089 = vld [vmem:[#allocation2 + $0x48] sm:$0xff]
        %v1090 = vld [vmem:[#allocation2 + $0x50] sm:$0xff]
        %v1091 = vld [vmem:[#allocation2 + $0x58] sm:$0xff]
        %v1092 = vld [vmem:[#allocation2 + $0x60] sm:$0xff]
        %v1093 = vld [vmem:[#allocation2 + $0x68] sm:$0xff]
        %v1094 = vld [vmem:[#allocation2 + $0x70] sm:$0xff]
        %v1095 = vld [vmem:[#allocation2 + $0x78] sm:$0xff]
        %v1096 = vld [vmem:[#allocation3] sm:$0xff]
        %v1097 = vld [vmem:[#allocation3 + $0x8] sm:$0xff]
        %v1098 = vld [vmem:[#allocation3 + $0x10] sm:$0xff]
        %v1099 = vld [vmem:[#allocation3 + $0x18] sm:$0xff]
        %v1100 = vld [vmem:[#allocation3 + $0x20] sm:$0xff]
        %v1101 = vld [vmem:[#allocation3 + $0x28] sm:$0xff]
        %v1102 = vld [vmem:[#allocation3 + $0x30] sm:$0xff]
        %v1103 = vld [vmem:[#allocation3 + $0x38] sm:$0xff]
        %v1104 = vld [vmem:[#allocation3 + $0x40] sm:$0xff]
        %v1105 = vld [vmem:[#allocation3 + $0x48] sm:$0xff]
        %v1106 = vld [vmem:[#allocation3 + $0x50] sm:$0xff]
        %v1107 = vld [vmem:[#allocation3 + $0x58] sm:$0xff]
        %v1108 = vld [vmem:[#allocation3 + $0x60] sm:$0xff]
        %v1109 = vld [vmem:[#allocation3 + $0x68] sm:$0xff]
        %v1110 = vld [vmem:[#allocation3 + $0x70] sm:$0xff]
        %v1111 = vld [vmem:[#allocation3 + $0x78] sm:$0xff]
        %v1112 = vmax.f32 %v1096, 1e-30
        %v1113 = vmax.f32 %v1097, 1e-30
        %v1114 = vmax.f32 %v1098, 1e-30
        %v1115 = vmax.f32 %v1099, 1e-30
        %v1116 = vmax.f32 %v1100, 1e-30
        %v1117 = vmax.f32 %v1101, 1e-30
        %v1118 = vmax.f32 %v1102, 1e-30
        %v1119 = vmax.f32 %v1103, 1e-30
        %v1120 = vmax.f32 %v1104, 1e-30
        %v1121 = vmax.f32 %v1105, 1e-30
        %v1122 = vmax.f32 %v1106, 1e-30
        %v1123 = vmax.f32 %v1107, 1e-30
        %v1124 = vmax.f32 %v1108, 1e-30
        %v1125 = vmax.f32 %v1109, 1e-30
        %v1126 = vmax.f32 %v1110, 1e-30
        %v1127 = vmax.f32 %v1111, 1e-30
        %v1128 = vlog2.pop %v1112
        %v1129 = vmul.f32 %v1128, 0.6931472
        %v1130 = vlog2.pop %v1113
        %v1131 = vmul.f32 %v1130, 0.6931472
        %v1132 = vlog2.pop %v1114
        %v1133 = vmul.f32 %v1132, 0.6931472
        %v1134 = vlog2.pop %v1115
        %v1135 = vmul.f32 %v1134, 0.6931472
        %v1136 = vlog2.pop %v1116
        %v1137 = vmul.f32 %v1136, 0.6931472
        %v1138 = vlog2.pop %v1117
        %v1139 = vmul.f32 %v1138, 0.6931472
        %v1140 = vlog2.pop %v1118
        %v1141 = vmul.f32 %v1140, 0.6931472
        %v1142 = vlog2.pop %v1119
        %v1143 = vmul.f32 %v1142, 0.6931472
        %v1144 = vlog2.pop %v1120
        %v1145 = vmul.f32 %v1144, 0.6931472
        %v1146 = vlog2.pop %v1121
        %v1147 = vmul.f32 %v1146, 0.6931472
        %v1148 = vlog2.pop %v1122
        %v1149 = vmul.f32 %v1148, 0.6931472
        %v1150 = vlog2.pop %v1123
        %v1151 = vmul.f32 %v1150, 0.6931472
        %v1152 = vlog2.pop %v1124
        %v1153 = vmul.f32 %v1152, 0.6931472
        %v1154 = vlog2.pop %v1125
        %v1155 = vmul.f32 %v1154, 0.6931472
        %v1156 = vlog2.pop %v1126
        %v1157 = vmul.f32 %v1156, 0.6931472
        %v1158 = vlog2.pop %v1127
        %v1159 = vmul.f32 %v1158, 0.6931472
        %v1160 = vadd.f32 %v1080, %v1129
        %v1161 = vadd.f32 %v1081, %v1131
        %v1162 = vadd.f32 %v1082, %v1133
        %v1163 = vadd.f32 %v1083, %v1135
        %v1164 = vadd.f32 %v1084, %v1137
        %v1165 = vadd.f32 %v1085, %v1139
        %v1166 = vadd.f32 %v1086, %v1141
        %v1167 = vadd.f32 %v1087, %v1143
        %v1168 = vadd.f32 %v1088, %v1145
        %v1169 = vadd.f32 %v1089, %v1147
        %v1170 = vadd.f32 %v1090, %v1149
        %v1171 = vadd.f32 %v1091, %v1151
        %v1172 = vadd.f32 %v1092, %v1153
        %v1173 = vadd.f32 %v1093, %v1155
        %v1174 = vadd.f32 %v1094, %v1157
        %v1175 = vadd.f32 %v1095, %v1159
        %1192 = vrot.lane.b32.xlu0 %v1160, 2
        %v1193 = vpop.permute.xlu0 %1192
        %1194 = vrot.lane.b32.xlu0 %v1161, 2
        %v1195 = vpop.permute.xlu0 %1194
        %1196 = vrot.lane.b32.xlu0 %v1162, 2
        %v1197 = vpop.permute.xlu0 %1196
        %1198 = vrot.lane.b32.xlu0 %v1163, 2
        %v1199 = vpop.permute.xlu0 %1198
        %1200 = vrot.lane.b32.xlu0 %v1164, 2
        %v1201 = vpop.permute.xlu0 %1200
        %1202 = vrot.lane.b32.xlu0 %v1165, 2
        %v1203 = vpop.permute.xlu0 %1202
        %1204 = vrot.lane.b32.xlu0 %v1166, 2
        %v1205 = vpop.permute.xlu0 %1204
        %1206 = vrot.lane.b32.xlu0 %v1167, 2
        %v1207 = vpop.permute.xlu0 %1206
        %1208 = vrot.lane.b32.xlu0 %v1168, 2
        %v1209 = vpop.permute.xlu0 %1208
        %1210 = vrot.lane.b32.xlu0 %v1169, 2
        %v1211 = vpop.permute.xlu0 %1210
        %1212 = vrot.lane.b32.xlu0 %v1170, 2
        %v1213 = vpop.permute.xlu0 %1212
        %1214 = vrot.lane.b32.xlu0 %v1171, 2
        %v1215 = vpop.permute.xlu0 %1214
        %1216 = vrot.lane.b32.xlu0 %v1172, 2
        %v1217 = vpop.permute.xlu0 %1216
        %1218 = vrot.lane.b32.xlu0 %v1173, 2
        %v1219 = vpop.permute.xlu0 %1218
        %1220 = vrot.lane.b32.xlu0 %v1174, 2
        %v1221 = vpop.permute.xlu0 %1220
        %1222 = vrot.lane.b32.xlu0 %v1175, 2
        %v1223 = vpop.permute.xlu0 %1222
        %v1240 = vsub.f32 %v1064, %v1193
        %v1241 = vsub.f32 %v1065, %v1195
        %v1242 = vsub.f32 %v1066, %v1197
        %v1243 = vsub.f32 %v1067, %v1199
        %v1244 = vsub.f32 %v1068, %v1201
        %v1245 = vsub.f32 %v1069, %v1203
        %v1246 = vsub.f32 %v1070, %v1205
        %v1247 = vsub.f32 %v1071, %v1207
        %v1248 = vsub.f32 %v1072, %v1209
        %v1249 = vsub.f32 %v1073, %v1211
        %v1250 = vsub.f32 %v1074, %v1213
        %v1251 = vsub.f32 %v1075, %v1215
        %v1252 = vsub.f32 %v1076, %v1217
        %v1253 = vsub.f32 %v1077, %v1219
        %v1254 = vsub.f32 %v1078, %v1221
        %v1255 = vsub.f32 %v1079, %v1223
        %1272 = vrot.lane.b32.xlu0 %v1240, 126
        %v1273 = vpop.permute.xlu0 %1272
        %1274 = vrot.lane.b32.xlu0 %v1241, 126
        %v1275 = vpop.permute.xlu0 %1274
        %1276 = vrot.lane.b32.xlu0 %v1242, 126
        %v1277 = vpop.permute.xlu0 %1276
        %1278 = vrot.lane.b32.xlu0 %v1243, 126
        %v1279 = vpop.permute.xlu0 %1278
        %1280 = vrot.lane.b32.xlu0 %v1244, 126
        %v1281 = vpop.permute.xlu0 %1280
        %1282 = vrot.lane.b32.xlu0 %v1245, 126
        %v1283 = vpop.permute.xlu0 %1282
        %1284 = vrot.lane.b32.xlu0 %v1246, 126
        %v1285 = vpop.permute.xlu0 %1284
        %1286 = vrot.lane.b32.xlu0 %v1247, 126
        %v1287 = vpop.permute.xlu0 %1286
        %1288 = vrot.lane.b32.xlu0 %v1248, 126
        %v1289 = vpop.permute.xlu0 %1288
        %1290 = vrot.lane.b32.xlu0 %v1249, 126
        %v1291 = vpop.permute.xlu0 %1290
        %1292 = vrot.lane.b32.xlu0 %v1250, 126
        %v1293 = vpop.permute.xlu0 %1292
        %1294 = vrot.lane.b32.xlu0 %v1251, 126
        %v1295 = vpop.permute.xlu0 %1294
        %1296 = vrot.lane.b32.xlu0 %v1252, 126
        %v1297 = vpop.permute.xlu0 %1296
        %1298 = vrot.lane.b32.xlu0 %v1253, 126
        %v1299 = vpop.permute.xlu0 %1298
        %1300 = vrot.lane.b32.xlu0 %v1254, 126
        %v1301 = vpop.permute.xlu0 %1300
        %1302 = vrot.lane.b32.xlu0 %v1255, 126
        %v1303 = vpop.permute.xlu0 %1302
        %v1320 = vmul.f32 %v1064, %v1273
        %v1321 = vmul.f32 %v1065, %v1275
        %v1322 = vmul.f32 %v1066, %v1277
        %v1323 = vmul.f32 %v1067, %v1279
        %v1324 = vmul.f32 %v1068, %v1281
        %v1325 = vmul.f32 %v1069, %v1283
        %v1326 = vmul.f32 %v1070, %v1285
        %v1327 = vmul.f32 %v1071, %v1287
        %v1328 = vmul.f32 %v1072, %v1289
        %v1329 = vmul.f32 %v1073, %v1291
        %v1330 = vmul.f32 %v1074, %v1293
        %v1331 = vmul.f32 %v1075, %v1295
        %v1332 = vmul.f32 %v1076, %v1297
        %v1333 = vmul.f32 %v1077, %v1299
        %v1334 = vmul.f32 %v1078, %v1301
        %v1335 = vmul.f32 %v1079, %v1303
        %1352 = vrot.lane.b32.xlu0 %v1320, 1
        %v1353 = vpop.permute.xlu0 %1352
        %1354 = vrot.lane.b32.xlu0 %v1321, 1
        %v1355 = vpop.permute.xlu0 %1354
        %1356 = vrot.lane.b32.xlu0 %v1322, 1
        %v1357 = vpop.permute.xlu0 %1356
        %1358 = vrot.lane.b32.xlu0 %v1323, 1
        %v1359 = vpop.permute.xlu0 %1358
        %1360 = vrot.lane.b32.xlu0 %v1324, 1
        %v1361 = vpop.permute.xlu0 %1360
        %1362 = vrot.lane.b32.xlu0 %v1325, 1
        %v1363 = vpop.permute.xlu0 %1362
        %1364 = vrot.lane.b32.xlu0 %v1326, 1
        %v1365 = vpop.permute.xlu0 %1364
        %1366 = vrot.lane.b32.xlu0 %v1327, 1
        %v1367 = vpop.permute.xlu0 %1366
        %1368 = vrot.lane.b32.xlu0 %v1328, 1
        %v1369 = vpop.permute.xlu0 %1368
        %1370 = vrot.lane.b32.xlu0 %v1329, 1
        %v1371 = vpop.permute.xlu0 %1370
        %1372 = vrot.lane.b32.xlu0 %v1330, 1
        %v1373 = vpop.permute.xlu0 %1372
        %1374 = vrot.lane.b32.xlu0 %v1331, 1
        %v1375 = vpop.permute.xlu0 %1374
        %1376 = vrot.lane.b32.xlu0 %v1332, 1
        %v1377 = vpop.permute.xlu0 %1376
        %1378 = vrot.lane.b32.xlu0 %v1333, 1
        %v1379 = vpop.permute.xlu0 %1378
        %1380 = vrot.lane.b32.xlu0 %v1334, 1
        %v1381 = vpop.permute.xlu0 %1380
        %1382 = vrot.lane.b32.xlu0 %v1335, 1
        %v1383 = vpop.permute.xlu0 %1382
        %v1400 = vadd.f32 %v1064, %v1353
        %v1401 = vadd.f32 %v1065, %v1355
        %v1402 = vadd.f32 %v1066, %v1357
        %v1403 = vadd.f32 %v1067, %v1359
        %v1404 = vadd.f32 %v1068, %v1361
        %v1405 = vadd.f32 %v1069, %v1363
        %v1406 = vadd.f32 %v1070, %v1365
        %v1407 = vadd.f32 %v1071, %v1367
        %v1408 = vadd.f32 %v1072, %v1369
        %v1409 = vadd.f32 %v1073, %v1371
        %v1410 = vadd.f32 %v1074, %v1373
        %v1411 = vadd.f32 %v1075, %v1375
        %v1412 = vadd.f32 %v1076, %v1377
        %v1413 = vadd.f32 %v1077, %v1379
        %v1414 = vadd.f32 %v1078, %v1381
        %v1415 = vadd.f32 %v1079, %v1383
        %1432 = vrot.lane.b32.xlu0 %v1400, 127
        %v1433 = vpop.permute.xlu0 %1432
        %1434 = vrot.lane.b32.xlu0 %v1401, 127
        %v1435 = vpop.permute.xlu0 %1434
        %1436 = vrot.lane.b32.xlu0 %v1402, 127
        %v1437 = vpop.permute.xlu0 %1436
        %1438 = vrot.lane.b32.xlu0 %v1403, 127
        %v1439 = vpop.permute.xlu0 %1438
        %1440 = vrot.lane.b32.xlu0 %v1404, 127
        %v1441 = vpop.permute.xlu0 %1440
        %1442 = vrot.lane.b32.xlu0 %v1405, 127
        %v1443 = vpop.permute.xlu0 %1442
        %1444 = vrot.lane.b32.xlu0 %v1406, 127
        %v1445 = vpop.permute.xlu0 %1444
        %1446 = vrot.lane.b32.xlu0 %v1407, 127
        %v1447 = vpop.permute.xlu0 %1446
        %1448 = vrot.lane.b32.xlu0 %v1408, 127
        %v1449 = vpop.permute.xlu0 %1448
        %1450 = vrot.lane.b32.xlu0 %v1409, 127
        %v1451 = vpop.permute.xlu0 %1450
        %1452 = vrot.lane.b32.xlu0 %v1410, 127
        %v1453 = vpop.permute.xlu0 %1452
        %1454 = vrot.lane.b32.xlu0 %v1411, 127
        %v1455 = vpop.permute.xlu0 %1454
        %1456 = vrot.lane.b32.xlu0 %v1412, 127
        %v1457 = vpop.permute.xlu0 %1456
        %1458 = vrot.lane.b32.xlu0 %v1413, 127
        %v1459 = vpop.permute.xlu0 %1458
        %1460 = vrot.lane.b32.xlu0 %v1414, 127
        %v1461 = vpop.permute.xlu0 %1460
        %1462 = vrot.lane.b32.xlu0 %v1415, 127
        %v1463 = vpop.permute.xlu0 %1462
        %v1480 = vsel %vm875, %v1433, 0.0
        %v1481 = vsel %vm875, %v1435, 0.0
        %v1482 = vadd.f32 %v1480, %v1481
        %v1483 = vsel %vm875, %v1437, 0.0
        %v1484 = vadd.f32 %v1482, %v1483
        %v1485 = vsel %vm875, %v1439, 0.0
        %v1486 = vadd.f32 %v1484, %v1485
        %v1487 = vsel %vm875, %v1441, 0.0
        %v1488 = vadd.f32 %v1486, %v1487
        %v1489 = vsel %vm875, %v1443, 0.0
        %v1490 = vadd.f32 %v1488, %v1489
        %v1491 = vsel %vm875, %v1445, 0.0
        %v1492 = vadd.f32 %v1490, %v1491
        %v1493 = vsel %vm875, %v1447, 0.0
        %v1494 = vadd.f32 %v1492, %v1493
        %v1495 = vsel %vm875, %v1449, 0.0
        %v1496 = vadd.f32 %v1494, %v1495
        %v1497 = vsel %vm875, %v1451, 0.0
        %v1498 = vadd.f32 %v1496, %v1497
        %v1499 = vsel %vm875, %v1453, 0.0
        %v1500 = vadd.f32 %v1498, %v1499
        %v1501 = vsel %vm875, %v1455, 0.0
        %v1502 = vadd.f32 %v1500, %v1501
        %v1503 = vsel %vm875, %v1457, 0.0
        %v1504 = vadd.f32 %v1502, %v1503
        %v1505 = vsel %vm875, %v1459, 0.0
        %v1506 = vadd.f32 %v1504, %v1505
        %v1507 = vsel %vm875, %v1461, 0.0
        %v1508 = vadd.f32 %v1506, %v1507
        %v1509 = vsel %vm875, %v1463, 0.0
        %v1510 = vadd.f32 %v1508, %v1509
        %1511 = vadd.xlane.f32.xlu0 %v1510
        %v1512 = vpop.xlane.xlu0 %1511
        %v1513 = vrot.slane %v1512, 4
        %v1514 = vadd.f32 %v1512, %v1513
        %v1515 = vrot.slane %v1514, 2
        %v1516 = vadd.f32 %v1514, %v1515
        %v1517 = vrot.slane %v1516, 1
        %v1518 = vadd.f32 %v1516, %v1517
        %s1519 = vtos %v1518
        %v1520 = vstv %s1519
        %v1521 = vsub.f32 0.0, %v1520
        %v1522 = vld [vmem:[#allocation6] sm:$0x1]
        %s1523 = scalar_select %p1013, 1, 0
        %v1524 = vstv %s1523
        %vm1525 = vcmp.eq.s32.totalorder %v1524, 1
        %v1526 = vsel %vm1525, %v1522, 0.0
        %v1527 = vadd.f32 %v1521, %v1526
        %v1529 = vperm.slane %v1527, 0
        %1530 = vset.pattern.permute.xlu0 0
        %1531 = vperm.xlu0 %1530, %v1529
        %v1532 = vpop.permute.xlu0 %1531
        %1534 = vst [vmem:[%s360] sm:$0xff] %v1532
      $region60: #{negative_weighted_clip_loss.1} parent=43 // pred_fallthru
        _
      %p1535 = scmp.lt.s32.totalorder %s21, 1
      %s1536 = scalar_select %p1535, %s21, 1
      %s1537 = smul.addr %s1536, 8
      %s1538 = scalar_lea.vmem %s6, %s1537
      // Predicated region
      $region61: #{negative_weighted_clip_loss.1} parent=43 // pred_check
        %p1539 = pneg %p203
      $region62: #{negative_weighted_clip_loss.1} parent=43 // pred_check_branch
        %1541 = sbr.rel (%p1539) target = $region64
      $region63: #{negative_weighted_clip_loss.1} parent=43 // pred_region
        _
      $region64: #{negative_weighted_clip_loss.1} parent=43 // pred_fallthru
        _
    $region44: #{negative_weighted_clip_loss.1} parent=5 // pred_fallthru
      _
    %p1542 = scmp.le.s32.totalorder 2, %s12
    // Predicated region
    $region65: #{negative_weighted_clip_loss.1} parent=5 // pred_check
      %p1543 = pneg %p1542
    $region66: #{negative_weighted_clip_loss.1} parent=5 // pred_check_branch
      %1545 = sbr.rel (%p1543) target = $region68
    $region67: #{negative_weighted_clip_loss.1} parent=5 // pred_region
      %s1546 = ssub.s32 %s12, 2
      // Predicated region
      $region69: #{negative_weighted_clip_loss.1} parent=67 // pred_check
        %p1547 = pneg %p209
      $region70: #{negative_weighted_clip_loss.1} parent=67 // pred_check_branch
        %1549 = sbr.rel (%p1547) target = $region72
      $region71: #{negative_weighted_clip_loss.1} parent=67 // pred_region
        %p1550 = scmp.lt.s32.totalorder %s23, 1
        %s1551 = scalar_select %p1550, %s23, 1
        %s1552 = smul.addr %s1551, 8
        %s1553 = scalar_lea.vmem %s6, %s1552
      $region72: #{negative_weighted_clip_loss.1} parent=67 // pred_fallthru
        _
    $region68: #{negative_weighted_clip_loss.1} parent=5 // pred_fallthru
      _
  $region6: #{negative_weighted_clip_loss.1} parent=0 // loop_footer
    %s16 = sadd.s32 1, %s12
  $region7: #{negative_weighted_clip_loss.1} parent=0 // loop_footer_branch
    %11 = sbr.rel target = $region3
  $region8: #{negative_weighted_clip_loss.1} parent=0 // loop_exit
    _

</llo_original>
